<compile_context>
chip_gen: v7x
topology: tpu7x:2x2x1
jax: 0.10.0
libtpu: 0.0.40
codegen_flags: <defaults>
</compile_context>

<pallas_src>
import functools
import math

import jax
import jax.numpy as jnp
from jax.experimental import pallas as pl
from jax.experimental.pallas import tpu as pltpu


# ----------------------------------------------------------------------------
# tile-size helper
# ----------------------------------------------------------------------------
def _pick_tile(dim, cap, align):
    """Largest tile <= cap that divides dim (multiple of `align` when tiling)."""
    if dim <= cap:
        return dim
    t = (cap // align) * align
    while t >= align:
        if dim % t == 0:
            return t
        t -= align
    return dim  # no aligned divisor <= cap -> fall back to the full (untiled) dim


# ----------------------------------------------------------------------------
# Kernel 1: tiled linear  o = x @ w + b
# ----------------------------------------------------------------------------
def _linear_kernel(x_ref, w_ref, b_ref, o_ref, acc_ref):
    k = pl.program_id(2)

    @pl.when(k == 0)
    def _():
        acc_ref[...] = jnp.zeros_like(acc_ref)

    acc_ref[...] += jnp.dot(x_ref[...], w_ref[...],
                            preferred_element_type=jnp.float32)

    @pl.when(k == pl.num_programs(2) - 1)
    def _():
        o_ref[...] = (acc_ref[...] +
                      b_ref[...].astype(jnp.float32)).astype(o_ref.dtype)


def pallas_linear(x2d, w, b, *, tm_cap=512, tn_cap=512, tk_cap=512):
    """x2d: [M, K], w: [K, N], b: [N] -> [M, N]."""
    M, K = x2d.shape
    N = w.shape[1]
    tm = _pick_tile(M, tm_cap, 8)
    tn = _pick_tile(N, tn_cap, 128)
    tk = _pick_tile(K, tk_cap, 128)
    grid = (M // tm, N // tn, K // tk)
    itemsize = jnp.dtype(x2d.dtype).itemsize
    cost = pl.CostEstimate(
        flops=2 * M * N * K,
        transcendentals=0,
        bytes_accessed=(M * K + K * N + M * N + N) * itemsize,
    )
    # TODO(synk): on v6e/v7x, casting matmul inputs to bf16 (fp32 accumulation)
    # roughly doubles MXU throughput and halves tile VMEM; kept fp32 here to match
    # the PyTorch module's numerics exactly.
    return pl.pallas_call(
        _linear_kernel,
        out_shape=jax.ShapeDtypeStruct((M, N), x2d.dtype),
        grid_spec=pltpu.PrefetchScalarGridSpec(
            num_scalar_prefetch=0,
            grid=grid,
            in_specs=[
                pl.BlockSpec((tm, tk), lambda i, j, k: (i, k)),
                pl.BlockSpec((tk, tn), lambda i, j, k: (k, j)),
                pl.BlockSpec((1, tn), lambda i, j, k: (0, j)),
            ],
            out_specs=pl.BlockSpec((tm, tn), lambda i, j, k: (i, j)),
            scratch_shapes=[pltpu.VMEM((tm, tn), jnp.float32)],
        ),
        compiler_params=pltpu.CompilerParams(
            dimension_semantics=("parallel", "parallel", "arbitrary"),
            vmem_limit_bytes=32 * 1024 * 1024,
        ),
        cost_estimate=cost,
    )(x2d, w, b.reshape(1, N))


# ----------------------------------------------------------------------------
# Kernel 2: multi-head scaled dot-product attention
#   qkv: [B, S, 3D]  (columns laid out as [q | k | v], each D = H * HD wide)
#   one program per batch element; all heads processed in-kernel.
# ----------------------------------------------------------------------------
def _attn_kernel(qkv_ref, o_ref, *, num_heads, head_dim, scale):
    qkv = qkv_ref[0].astype(jnp.float32)           # [S, 3D]; softmax math in fp32
    D = num_heads * head_dim
    outs = []
    for h in range(num_heads):                     # unrolled: all heads, one program
        q = qkv[:, h * head_dim:(h + 1) * head_dim] * scale            # [S, HD]
        k = qkv[:, D + h * head_dim:D + (h + 1) * head_dim]            # [S, HD]
        v = qkv[:, 2 * D + h * head_dim:2 * D + (h + 1) * head_dim]    # [S, HD]
        # q @ k^T without an explicit transpose: contract last axis of both operands.
        s = jax.lax.dot_general(q, k, (((1,), (1,)), ((), ())),
                                preferred_element_type=jnp.float32)    # [S, S]
        m = jnp.max(s, axis=-1, keepdims=True)
        e = jnp.exp(s - m)
        denom = jnp.sum(e, axis=-1, keepdims=True)
        p = e * pl.reciprocal(denom, approx=True)                      # EUP slot
        outs.append(jnp.dot(p, v, preferred_element_type=jnp.float32))  # [S, HD]
    # Merge heads along the last dim -> single lane-dense [S, D] store.
    o_ref[0] = jnp.concatenate(outs, axis=-1).astype(o_ref.dtype)


def pallas_attention(qkv, num_heads, head_dim):
    """qkv: [B, S, 3*D] -> attention output [B, S, D]."""
    B, S, threeD = qkv.shape
    D = num_heads * head_dim
    assert threeD == 3 * D
    scale = 1.0 / math.sqrt(head_dim)
    kernel = functools.partial(_attn_kernel, num_heads=num_heads,
                               head_dim=head_dim, scale=scale)
    itemsize = jnp.dtype(qkv.dtype).itemsize
    cost = pl.CostEstimate(
        flops=4 * B * num_heads * S * S * head_dim,
        transcendentals=B * num_heads * S * S,
        bytes_accessed=(B * S * 3 * D + B * S * D) * itemsize,
    )
    # TODO(synk): for long sequences, convert to a flash-attention structure
    # (KV grid axis marked "arbitrary" + online-softmax m/l/acc scratch) so VMEM
    # stays O(tile) instead of O(S^2).
    return pl.pallas_call(
        kernel,
        out_shape=jax.ShapeDtypeStruct((B, S, D), qkv.dtype),
        grid_spec=pltpu.PrefetchScalarGridSpec(
            num_scalar_prefetch=0,
            grid=(B,),
            in_specs=[pl.BlockSpec((1, S, 3 * D), lambda b: (b, 0, 0))],
            out_specs=pl.BlockSpec((1, S, D), lambda b: (b, 0, 0)),
        ),
        compiler_params=pltpu.CompilerParams(
            dimension_semantics=("parallel",),
            vmem_limit_bytes=32 * 1024 * 1024,
        ),
        cost_estimate=cost,
    )(qkv)


# ----------------------------------------------------------------------------
# Full module forward (glue in plain JAX, hot paths in Pallas)
# ----------------------------------------------------------------------------
def multi_head_attention(x, params, num_heads):
    """x: [S, B, D] -> [S, B, D] (matches the PyTorch module's layout)."""
    S, B, D = x.shape
    assert D % num_heads == 0, "embed_dim must be divisible by num_heads"
    head_dim = D // num_heads

    w_qkv = params["w_qkv"]   # [3D, D]   (PyTorch Linear layout [out, in])
    b_qkv = params["b_qkv"]   # [3D]
    w_out = params["w_out"]   # [D, D]
    b_out = params["b_out"]   # [D]

    # Batch-major internally: a single transpose here (and one at the end) lets the
    # head split/merge live inside the attention kernel instead of HBM transposes.
    xb = jnp.transpose(x, (1, 0, 2)).reshape(B * S, D)            # [B*S, D]

    qkv = pallas_linear(xb, w_qkv.T, b_qkv)                       # [B*S, 3D]
    attn = pallas_attention(qkv.reshape(B, S, 3 * D), num_heads, head_dim)  # [B,S,D]

    out = pallas_linear(attn.reshape(B * S, D), w_out.T, b_out)   # [B*S, D]
    return jnp.transpose(out.reshape(B, S, D), (1, 0, 2))         # [S, B, D]


def init_params(key, embed_dim):
    k1, k2, k3, k4 = jax.random.split(key, 4)
    scale = 1.0 / math.sqrt(embed_dim)
    return {
        "w_qkv": jax.random.uniform(k1, (3 * embed_dim, embed_dim),
                                    jnp.float32, -scale, scale),
        "b_qkv": jax.random.uniform(k2, (3 * embed_dim,),
                                    jnp.float32, -scale, scale),
        "w_out": jax.random.uniform(k3, (embed_dim, embed_dim),
                                    jnp.float32, -scale, scale),
        "b_out": jax.random.uniform(k4, (embed_dim,),
                                    jnp.float32, -scale, scale),
    }


def reference_mha(x, params, num_heads):
    """Pure-JAX reference mirroring the PyTorch module."""
    S, B, D = x.shape
    HD = D // num_heads
    qkv = x @ params["w_qkv"].T + params["b_qkv"]                 # [S, B, 3D]
    q, k, v = jnp.split(qkv, 3, axis=-1)

    def heads(t):
        return t.reshape(S, B * num_heads, HD).transpose(1, 0, 2)

    q, k, v = heads(q), heads(k), heads(v)
    s = (q @ jnp.swapaxes(k, 1, 2)) / math.sqrt(HD)
    p = jax.nn.softmax(s, axis=-1)
    o = (p @ v).transpose(1, 0, 2).reshape(S, B, D)
    return o @ params["w_out"].T + params["b_out"]


if __name__ == "__main__":
    seq, batch, embed_dim, num_heads = 8, 2, 32, 4

    key = jax.random.PRNGKey(0)
    kx, kp = jax.random.split(key)
    x = jax.random.normal(kx, (seq, batch, embed_dim), jnp.float32)
    params = init_params(kp, embed_dim)

    fwd = jax.jit(multi_head_attention, static_argnums=2)
    out = jax.block_until_ready(fwd(x, params, num_heads))

    assert out.shape == (seq, batch, embed_dim)
    assert out.dtype == jnp.float32

    ref = reference_mha(x, params, num_heads)
    assert jnp.allclose(out, ref, rtol=1e-2, atol=1e-2), \
        "Pallas output mismatch vs JAX reference"

    print("KERNEL_OK")
</pallas_src>

<mosaic_0001>
module attributes {stable_mosaic.version = 11 : i64} {
  func.func @_attn_kernel(%arg0: i32, %arg1: memref<1x8x96xf32, #tpu.memory_space<vmem>>, %arg2: memref<1x8x32xf32, #tpu.memory_space<vmem>>) attributes {dimension_semantics = [#tpu.dimension_semantics<parallel>], iteration_bounds = array<i64: 2>, scalar_prefetch = 0 : i64, scratch_operands = 0 : i64, tpu.core_type = #tpu.core_type<tc>, window_params = [{transform_indices = @transform_0, window_bounds = array<i64: 1, 8, 96>}, {transform_indices = @transform_1, window_bounds = array<i64: 1, 8, 32>}]} {
    %c0 = arith.constant 0 : index
    %c0_0 = arith.constant 0 : index
    %c0_1 = arith.constant 0 : index
    %0 = vector.load %arg1[%c0, %c0_0, %c0_1] : memref<1x8x96xf32, #tpu.memory_space<vmem>>, vector<1x8x96xf32>
    %1 = vector.shape_cast %0 : vector<1x8x96xf32> to vector<8x96xf32>
    %2 = vector.extract_strided_slice %1 {offsets = [0, 0], sizes = [8, 8], strides = [1, 1]} : vector<8x96xf32> to vector<8x8xf32>
    %cst = arith.constant 0.353553385 : f32
    %3 = vector.broadcast %cst : f32 to vector<8x8xf32>
    %4 = arith.mulf %2, %3 : vector<8x8xf32>
    %5 = vector.extract_strided_slice %1 {offsets = [0, 32], sizes = [8, 8], strides = [1, 1]} : vector<8x96xf32> to vector<8x8xf32>
    %6 = vector.extract_strided_slice %1 {offsets = [0, 64], sizes = [8, 8], strides = [1, 1]} : vector<8x96xf32> to vector<8x8xf32>
    %cst_2 = arith.constant dense<0.000000e+00> : vector<8x8xf32>
    %7 = tpu.matmul %4, %5, %cst_2 {dimension_numbers = #tpu.dot_dimension_numbers<[1], [1], [0], [0], [0, 0, 1, 0], [], []>} : vector<8x8xf32>, vector<8x8xf32>, vector<8x8xf32> -> vector<8x8xf32>
    %cst_3 = arith.constant dense<0xFF800000> : vector<8xf32>
    %8 = vector.multi_reduction <maximumf>, %7, %cst_3 [1] : vector<8x8xf32> to vector<8xf32>
    %9 = vector.shape_cast %8 : vector<8xf32> to vector<8x1xf32>
    %10 = vector.broadcast %9 : vector<8x1xf32> to vector<8x8xf32>
    %11 = arith.subf %7, %10 : vector<8x8xf32>
    %12 = math.exp %11 : vector<8x8xf32>
    %cst_4 = arith.constant dense<0.000000e+00> : vector<8xf32>
    %13 = vector.multi_reduction <add>, %12, %cst_4 [1] : vector<8x8xf32> to vector<8xf32>
    %14 = vector.shape_cast %13 : vector<8xf32> to vector<8x1xf32>
    %15 = tpu.reciprocal %14 {approx = true} : vector<8x1xf32> -> vector<8x1xf32>
    %16 = vector.broadcast %15 : vector<8x1xf32> to vector<8x8xf32>
    %17 = arith.mulf %12, %16 : vector<8x8xf32>
    %cst_5 = arith.constant dense<0.000000e+00> : vector<8x8xf32>
    %18 = tpu.matmul %17, %6, %cst_5 {dimension_numbers = #tpu.dot_dimension_numbers<[1], [0], [0], [1], [0, 0, 1, 1], [], []>} : vector<8x8xf32>, vector<8x8xf32>, vector<8x8xf32> -> vector<8x8xf32>
    %19 = vector.extract_strided_slice %1 {offsets = [0, 8], sizes = [8, 8], strides = [1, 1]} : vector<8x96xf32> to vector<8x8xf32>
    %cst_6 = arith.constant 0.353553385 : f32
    %20 = vector.broadcast %cst_6 : f32 to vector<8x8xf32>
    %21 = arith.mulf %19, %20 : vector<8x8xf32>
    %22 = vector.extract_strided_slice %1 {offsets = [0, 40], sizes = [8, 8], strides = [1, 1]} : vector<8x96xf32> to vector<8x8xf32>
    %23 = vector.extract_strided_slice %1 {offsets = [0, 72], sizes = [8, 8], strides = [1, 1]} : vector<8x96xf32> to vector<8x8xf32>
    %cst_7 = arith.constant dense<0.000000e+00> : vector<8x8xf32>
    %24 = tpu.matmul %21, %22, %cst_7 {dimension_numbers = #tpu.dot_dimension_numbers<[1], [1], [0], [0], [0, 0, 1, 0], [], []>} : vector<8x8xf32>, vector<8x8xf32>, vector<8x8xf32> -> vector<8x8xf32>
    %cst_8 = arith.constant dense<0xFF800000> : vector<8xf32>
    %25 = vector.multi_reduction <maximumf>, %24, %cst_8 [1] : vector<8x8xf32> to vector<8xf32>
    %26 = vector.shape_cast %25 : vector<8xf32> to vector<8x1xf32>
    %27 = vector.broadcast %26 : vector<8x1xf32> to vector<8x8xf32>
    %28 = arith.subf %24, %27 : vector<8x8xf32>
    %29 = math.exp %28 : vector<8x8xf32>
    %cst_9 = arith.constant dense<0.000000e+00> : vector<8xf32>
    %30 = vector.multi_reduction <add>, %29, %cst_9 [1] : vector<8x8xf32> to vector<8xf32>
    %31 = vector.shape_cast %30 : vector<8xf32> to vector<8x1xf32>
    %32 = tpu.reciprocal %31 {approx = true} : vector<8x1xf32> -> vector<8x1xf32>
    %33 = vector.broadcast %32 : vector<8x1xf32> to vector<8x8xf32>
    %34 = arith.mulf %29, %33 : vector<8x8xf32>
    %cst_10 = arith.constant dense<0.000000e+00> : vector<8x8xf32>
    %35 = tpu.matmul %34, %23, %cst_10 {dimension_numbers = #tpu.dot_dimension_numbers<[1], [0], [0], [1], [0, 0, 1, 1], [], []>} : vector<8x8xf32>, vector<8x8xf32>, vector<8x8xf32> -> vector<8x8xf32>
    %36 = vector.extract_strided_slice %1 {offsets = [0, 16], sizes = [8, 8], strides = [1, 1]} : vector<8x96xf32> to vector<8x8xf32>
    %cst_11 = arith.constant 0.353553385 : f32
    %37 = vector.broadcast %cst_11 : f32 to vector<8x8xf32>
    %38 = arith.mulf %36, %37 : vector<8x8xf32>
    %39 = vector.extract_strided_slice %1 {offsets = [0, 48], sizes = [8, 8], strides = [1, 1]} : vector<8x96xf32> to vector<8x8xf32>
    %40 = vector.extract_strided_slice %1 {offsets = [0, 80], sizes = [8, 8], strides = [1, 1]} : vector<8x96xf32> to vector<8x8xf32>
    %cst_12 = arith.constant dense<0.000000e+00> : vector<8x8xf32>
    %41 = tpu.matmul %38, %39, %cst_12 {dimension_numbers = #tpu.dot_dimension_numbers<[1], [1], [0], [0], [0, 0, 1, 0], [], []>} : vector<8x8xf32>, vector<8x8xf32>, vector<8x8xf32> -> vector<8x8xf32>
    %cst_13 = arith.constant dense<0xFF800000> : vector<8xf32>
    %42 = vector.multi_reduction <maximumf>, %41, %cst_13 [1] : vector<8x8xf32> to vector<8xf32>
    %43 = vector.shape_cast %42 : vector<8xf32> to vector<8x1xf32>
    %44 = vector.broadcast %43 : vector<8x1xf32> to vector<8x8xf32>
    %45 = arith.subf %41, %44 : vector<8x8xf32>
    %46 = math.exp %45 : vector<8x8xf32>
    %cst_14 = arith.constant dense<0.000000e+00> : vector<8xf32>
    %47 = vector.multi_reduction <add>, %46, %cst_14 [1] : vector<8x8xf32> to vector<8xf32>
    %48 = vector.shape_cast %47 : vector<8xf32> to vector<8x1xf32>
    %49 = tpu.reciprocal %48 {approx = true} : vector<8x1xf32> -> vector<8x1xf32>
    %50 = vector.broadcast %49 : vector<8x1xf32> to vector<8x8xf32>
    %51 = arith.mulf %46, %50 : vector<8x8xf32>
    %cst_15 = arith.constant dense<0.000000e+00> : vector<8x8xf32>
    %52 = tpu.matmul %51, %40, %cst_15 {dimension_numbers = #tpu.dot_dimension_numbers<[1], [0], [0], [1], [0, 0, 1, 1], [], []>} : vector<8x8xf32>, vector<8x8xf32>, vector<8x8xf32> -> vector<8x8xf32>
    %53 = vector.extract_strided_slice %1 {offsets = [0, 24], sizes = [8, 8], strides = [1, 1]} : vector<8x96xf32> to vector<8x8xf32>
    %cst_16 = arith.constant 0.353553385 : f32
    %54 = vector.broadcast %cst_16 : f32 to vector<8x8xf32>
    %55 = arith.mulf %53, %54 : vector<8x8xf32>
    %56 = vector.extract_strided_slice %1 {offsets = [0, 56], sizes = [8, 8], strides = [1, 1]} : vector<8x96xf32> to vector<8x8xf32>
    %57 = vector.extract_strided_slice %1 {offsets = [0, 88], sizes = [8, 8], strides = [1, 1]} : vector<8x96xf32> to vector<8x8xf32>
    %cst_17 = arith.constant dense<0.000000e+00> : vector<8x8xf32>
    %58 = tpu.matmul %55, %56, %cst_17 {dimension_numbers = #tpu.dot_dimension_numbers<[1], [1], [0], [0], [0, 0, 1, 0], [], []>} : vector<8x8xf32>, vector<8x8xf32>, vector<8x8xf32> -> vector<8x8xf32>
    %cst_18 = arith.constant dense<0xFF800000> : vector<8xf32>
    %59 = vector.multi_reduction <maximumf>, %58, %cst_18 [1] : vector<8x8xf32> to vector<8xf32>
    %60 = vector.shape_cast %59 : vector<8xf32> to vector<8x1xf32>
    %61 = vector.broadcast %60 : vector<8x1xf32> to vector<8x8xf32>
    %62 = arith.subf %58, %61 : vector<8x8xf32>
    %63 = math.exp %62 : vector<8x8xf32>
    %cst_19 = arith.constant dense<0.000000e+00> : vector<8xf32>
    %64 = vector.multi_reduction <add>, %63, %cst_19 [1] : vector<8x8xf32> to vector<8xf32>
    %65 = vector.shape_cast %64 : vector<8xf32> to vector<8x1xf32>
    %66 = tpu.reciprocal %65 {approx = true} : vector<8x1xf32> -> vector<8x1xf32>
    %67 = vector.broadcast %66 : vector<8x1xf32> to vector<8x8xf32>
    %68 = arith.mulf %63, %67 : vector<8x8xf32>
    %cst_20 = arith.constant dense<0.000000e+00> : vector<8x8xf32>
    %69 = tpu.matmul %68, %57, %cst_20 {dimension_numbers = #tpu.dot_dimension_numbers<[1], [0], [0], [1], [0, 0, 1, 1], [], []>} : vector<8x8xf32>, vector<8x8xf32>, vector<8x8xf32> -> vector<8x8xf32>
    %70 = tpu.concatenate %18, %35, %52, %69 in 1 : vector<8x8xf32>, vector<8x8xf32>, vector<8x8xf32>, vector<8x8xf32> -> vector<8x32xf32>
    %c0_21 = arith.constant 0 : index
    %c0_22 = arith.constant 0 : index
    %c0_23 = arith.constant 0 : index
    %71 = vector.load %arg2[%c0_21, %c0_22, %c0_23] : memref<1x8x32xf32, #tpu.memory_space<vmem>>, vector<1x8x32xf32>
    %72 = vector.shape_cast %71 : vector<1x8x32xf32> to vector<8x32xf32>
    %73 = vector.shape_cast %70 : vector<8x32xf32> to vector<1x8x32xf32>
    tpu.vector_store %arg2[%c0_21, %c0_22, %c0_23], %73 {strides = array<i32>} : memref<1x8x32xf32, #tpu.memory_space<vmem>>, vector<1x8x32xf32>,
    return
  }
  func.func @transform_0(%arg0: i32) -> (i32, i32, i32) {
    %c0_i32 = arith.constant 0 : i32
    %c0_i32_0 = arith.constant 0 : i32
    %c0_i32_1 = arith.constant 0 : i32
    return %arg0, %c0_i32, %c0_i32_0 : i32, i32, i32
  }
  func.func @transform_1(%arg0: i32) -> (i32, i32, i32) {
    %c0_i32 = arith.constant 0 : i32
    %c0_i32_0 = arith.constant 0 : i32
    %c0_i32_1 = arith.constant 0 : i32
    return %arg0, %c0_i32, %c0_i32_0 : i32, i32, i32
  }
}

module attributes {stable_mosaic.version = 11 : i64} {
  func.func @_linear_kernel(%arg0: i32, %arg1: i32, %arg2: i32, %arg3: memref<16x32xf32, #tpu.memory_space<vmem>>, %arg4: memref<32x96xf32, #tpu.memory_space<vmem>>, %arg5: memref<1x96xf32, #tpu.memory_space<vmem>>, %arg6: memref<16x96xf32, #tpu.memory_space<vmem>>, %arg7: memref<16x96xf32, #tpu.memory_space<vmem>>) attributes {dimension_semantics = [#tpu.dimension_semantics<parallel>, #tpu.dimension_semantics<parallel>, #tpu.dimension_semantics<arbitrary>], iteration_bounds = array<i64: 1, 1, 1>, scalar_prefetch = 0 : i64, scratch_operands = 1 : i64, tpu.core_type = #tpu.core_type<tc>, window_params = [{transform_indices = @transform_0, window_bounds = array<i64: 16, 32>}, {transform_indices = @transform_1, window_bounds = array<i64: 32, 96>}, {transform_indices = @transform_2, window_bounds = array<i64: 1, 96>}, {transform_indices = @transform_3, window_bounds = array<i64: 16, 96>}]} {
    %c0_i32 = arith.constant 0 : i32
    %0 = arith.cmpi eq, %arg2, %c0_i32 : i32
    %1 = arith.extui %0 : i1 to i32
    %c0_i32_0 = arith.constant 0 : i32
    %2 = arith.cmpi ne, %1, %c0_i32_0 : i32
    scf.if %2 {
      %cst_10 = arith.constant 0.000000e+00 : f32
      %12 = vector.broadcast %cst_10 : f32 to vector<16x96xf32>
      %c0_11 = arith.constant 0 : index
      %c0_12 = arith.constant 0 : index
      %13 = vector.load %arg7[%c0_11, %c0_12] : memref<16x96xf32, #tpu.memory_space<vmem>>, vector<16x96xf32>
      tpu.vector_store %arg7[%c0_11, %c0_12], %12 {strides = array<i32>} : memref<16x96xf32, #tpu.memory_space<vmem>>, vector<16x96xf32>,
    } else {
    }
    %c0 = arith.constant 0 : index
    %c0_1 = arith.constant 0 : index
    %3 = vector.load %arg7[%c0, %c0_1] : memref<16x96xf32, #tpu.memory_space<vmem>>, vector<16x96xf32>
    %c0_2 = arith.constant 0 : index
    %c0_3 = arith.constant 0 : index
    %4 = vector.load %arg3[%c0_2, %c0_3] : memref<16x32xf32, #tpu.memory_space<vmem>>, vector<16x32xf32>
    %c0_4 = arith.constant 0 : index
    %c0_5 = arith.constant 0 : index
    %5 = vector.load %arg4[%c0_4, %c0_5] : memref<32x96xf32, #tpu.memory_space<vmem>>, vector<32x96xf32>
    %cst = arith.constant dense<0.000000e+00> : vector<16x96xf32>
    %6 = tpu.matmul %4, %5, %cst {dimension_numbers = #tpu.dot_dimension_numbers<[1], [0], [0], [1], [0, 0, 1, 1], [], []>} : vector<16x32xf32>, vector<32x96xf32>, vector<16x96xf32> -> vector<16x96xf32>
    %7 = arith.addf %3, %6 : vector<16x96xf32>
    %c0_6 = arith.constant 0 : index
    %c0_7 = arith.constant 0 : index
    %8 = vector.load %arg7[%c0_6, %c0_7] : memref<16x96xf32, #tpu.memory_space<vmem>>, vector<16x96xf32>
    tpu.vector_store %arg7[%c0_6, %c0_7], %7 {strides = array<i32>} : memref<16x96xf32, #tpu.memory_space<vmem>>, vector<16x96xf32>,
    %c0_i32_8 = arith.constant 0 : i32
    %9 = arith.cmpi eq, %arg2, %c0_i32_8 : i32
    %10 = arith.extui %9 : i1 to i32
    %c0_i32_9 = arith.constant 0 : i32
    %11 = arith.cmpi ne, %10, %c0_i32_9 : i32
    scf.if %11 {
      %c0_10 = arith.constant 0 : index
      %c0_11 = arith.constant 0 : index
      %12 = vector.load %arg7[%c0_10, %c0_11] : memref<16x96xf32, #tpu.memory_space<vmem>>, vector<16x96xf32>
      %c0_12 = arith.constant 0 : index
      %c0_13 = arith.constant 0 : index
      %13 = vector.load %arg5[%c0_12, %c0_13] : memref<1x96xf32, #tpu.memory_space<vmem>>, vector<1x96xf32>
      %14 = vector.broadcast %13 : vector<1x96xf32> to vector<16x96xf32>
      %15 = arith.addf %12, %14 : vector<16x96xf32>
      %c0_14 = arith.constant 0 : index
      %c0_15 = arith.constant 0 : index
      %16 = vector.load %arg6[%c0_14, %c0_15] : memref<16x96xf32, #tpu.memory_space<vmem>>, vector<16x96xf32>
      tpu.vector_store %arg6[%c0_14, %c0_15], %15 {strides = array<i32>} : memref<16x96xf32, #tpu.memory_space<vmem>>, vector<16x96xf32>,
    } else {
    }
    return
  }
  func.func @transform_0(%arg0: i32, %arg1: i32, %arg2: i32) -> (i32, i32) {
    %c0_i32 = arith.constant 0 : i32
    return %arg0, %arg2 : i32, i32
  }
  func.func @transform_1(%arg0: i32, %arg1: i32, %arg2: i32) -> (i32, i32) {
    %c0_i32 = arith.constant 0 : i32
    return %arg2, %arg1 : i32, i32
  }
  func.func @transform_2(%arg0: i32, %arg1: i32, %arg2: i32) -> (i32, i32) {
    %c0_i32 = arith.constant 0 : i32
    %c0_i32_0 = arith.constant 0 : i32
    return %c0_i32, %arg1 : i32, i32
  }
  func.func @transform_3(%arg0: i32, %arg1: i32, %arg2: i32) -> (i32, i32) {
    %c0_i32 = arith.constant 0 : i32
    return %arg0, %arg1 : i32, i32
  }
}

module attributes {stable_mosaic.version = 11 : i64} {
  func.func @_linear_kernel(%arg0: i32, %arg1: i32, %arg2: i32, %arg3: memref<16x32xf32, #tpu.memory_space<vmem>>, %arg4: memref<32x32xf32, #tpu.memory_space<vmem>>, %arg5: memref<1x32xf32, #tpu.memory_space<vmem>>, %arg6: memref<16x32xf32, #tpu.memory_space<vmem>>, %arg7: memref<16x32xf32, #tpu.memory_space<vmem>>) attributes {dimension_semantics = [#tpu.dimension_semantics<parallel>, #tpu.dimension_semantics<parallel>, #tpu.dimension_semantics<arbitrary>], iteration_bounds = array<i64: 1, 1, 1>, scalar_prefetch = 0 : i64, scratch_operands = 1 : i64, tpu.core_type = #tpu.core_type<tc>, window_params = [{transform_indices = @transform_0, window_bounds = array<i64: 16, 32>}, {transform_indices = @transform_1, window_bounds = array<i64: 32, 32>}, {transform_indices = @transform_2, window_bounds = array<i64: 1, 32>}, {transform_indices = @transform_3, window_bounds = array<i64: 16, 32>}]} {
    %c0_i32 = arith.constant 0 : i32
    %0 = arith.cmpi eq, %arg2, %c0_i32 : i32
    %1 = arith.extui %0 : i1 to i32
    %c0_i32_0 = arith.constant 0 : i32
    %2 = arith.cmpi ne, %1, %c0_i32_0 : i32
    scf.if %2 {
      %cst_10 = arith.constant 0.000000e+00 : f32
      %12 = vector.broadcast %cst_10 : f32 to vector<16x32xf32>
      %c0_11 = arith.constant 0 : index
      %c0_12 = arith.constant 0 : index
      %13 = vector.load %arg7[%c0_11, %c0_12] : memref<16x32xf32, #tpu.memory_space<vmem>>, vector<16x32xf32>
      tpu.vector_store %arg7[%c0_11, %c0_12], %12 {strides = array<i32>} : memref<16x32xf32, #tpu.memory_space<vmem>>, vector<16x32xf32>,
    } else {
    }
    %c0 = arith.constant 0 : index
    %c0_1 = arith.constant 0 : index
    %3 = vector.load %arg7[%c0, %c0_1] : memref<16x32xf32, #tpu.memory_space<vmem>>, vector<16x32xf32>
    %c0_2 = arith.constant 0 : index
    %c0_3 = arith.constant 0 : index
    %4 = vector.load %arg3[%c0_2, %c0_3] : memref<16x32xf32, #tpu.memory_space<vmem>>, vector<16x32xf32>
    %c0_4 = arith.constant 0 : index
    %c0_5 = arith.constant 0 : index
    %5 = vector.load %arg4[%c0_4, %c0_5] : memref<32x32xf32, #tpu.memory_space<vmem>>, vector<32x32xf32>
    %cst = arith.constant dense<0.000000e+00> : vector<16x32xf32>
    %6 = tpu.matmul %4, %5, %cst {dimension_numbers = #tpu.dot_dimension_numbers<[1], [0], [0], [1], [0, 0, 1, 1], [], []>} : vector<16x32xf32>, vector<32x32xf32>, vector<16x32xf32> -> vector<16x32xf32>
    %7 = arith.addf %3, %6 : vector<16x32xf32>
    %c0_6 = arith.constant 0 : index
    %c0_7 = arith.constant 0 : index
    %8 = vector.load %arg7[%c0_6, %c0_7] : memref<16x32xf32, #tpu.memory_space<vmem>>, vector<16x32xf32>
    tpu.vector_store %arg7[%c0_6, %c0_7], %7 {strides = array<i32>} : memref<16x32xf32, #tpu.memory_space<vmem>>, vector<16x32xf32>,
    %c0_i32_8 = arith.constant 0 : i32
    %9 = arith.cmpi eq, %arg2, %c0_i32_8 : i32
    %10 = arith.extui %9 : i1 to i32
    %c0_i32_9 = arith.constant 0 : i32
    %11 = arith.cmpi ne, %10, %c0_i32_9 : i32
    scf.if %11 {
      %c0_10 = arith.constant 0 : index
      %c0_11 = arith.constant 0 : index
      %12 = vector.load %arg7[%c0_10, %c0_11] : memref<16x32xf32, #tpu.memory_space<vmem>>, vector<16x32xf32>
      %c0_12 = arith.constant 0 : index
      %c0_13 = arith.constant 0 : index
      %13 = vector.load %arg5[%c0_12, %c0_13] : memref<1x32xf32, #tpu.memory_space<vmem>>, vector<1x32xf32>
      %14 = vector.broadcast %13 : vector<1x32xf32> to vector<16x32xf32>
      %15 = arith.addf %12, %14 : vector<16x32xf32>
      %c0_14 = arith.constant 0 : index
      %c0_15 = arith.constant 0 : index
      %16 = vector.load %arg6[%c0_14, %c0_15] : memref<16x32xf32, #tpu.memory_space<vmem>>, vector<16x32xf32>
      tpu.vector_store %arg6[%c0_14, %c0_15], %15 {strides = array<i32>} : memref<16x32xf32, #tpu.memory_space<vmem>>, vector<16x32xf32>,
    } else {
    }
    return
  }
  func.func @transform_0(%arg0: i32, %arg1: i32, %arg2: i32) -> (i32, i32) {
    %c0_i32 = arith.constant 0 : i32
    return %arg0, %arg2 : i32, i32
  }
  func.func @transform_1(%arg0: i32, %arg1: i32, %arg2: i32) -> (i32, i32) {
    %c0_i32 = arith.constant 0 : i32
    return %arg2, %arg1 : i32, i32
  }
  func.func @transform_2(%arg0: i32, %arg1: i32, %arg2: i32) -> (i32, i32) {
    %c0_i32 = arith.constant 0 : i32
    %c0_i32_0 = arith.constant 0 : i32
    return %c0_i32, %arg1 : i32, i32
  }
  func.func @transform_3(%arg0: i32, %arg1: i32, %arg2: i32) -> (i32, i32) {
    %c0_i32 = arith.constant 0 : i32
    return %arg0, %arg1 : i32, i32
  }
}

</mosaic_0001>

<llo_original>
// kernel: multi_head_attention.3
$region0: #{multi_head_attention.3}
  #allocation0 [shape = 'u32[]', space=smem, size = 0x4, offset = 0x4, fixed_abs, tag = 'smem constant byte address 0x4 - core index']
  #allocation1 [shape = 'u32[144,128]{1,0:T(1,128)}', space=vmem, size = 0x12000, scoped, tag = 'internal scratch']
  #allocation2 [shape = 'f32[16,96]{1,0:T(8,128)}', space=vmem, size = 0x2000, scoped, tag = 'scratch operand']
  %s0 = inlined_call_operand.vmem [shape: f32[16,32], index: 0, kind: input, shape index: {}]
  %s1 = inlined_call_operand.vmem [shape: f32[32,96], index: 1, kind: input, shape index: {}]
  %s2 = inlined_call_operand.vmem [shape: f32[1,96], index: 2, kind: input, shape index: {}]
  %s3 = inlined_call_operand.vmem [shape: f32[16,96], index: 3, kind: output, shape index: {}]
  %s4 = sld [smem:[#allocation0]]
  $region30: #{multi_head_attention.3} parent=0
    _
  %s6 = ssub.s32 1, %s4
  %s7 = scalar_select 0, %s6, %s4
  // Predicated region
  $region2: #{multi_head_attention.3} parent=0 // pred_check
    _
  $region3: #{multi_head_attention.3} parent=0 // pred_check_branch
    %9 = sbr.rel (0) target = $region5
  $region4: #{multi_head_attention.3} parent=0 // pred_region
    _
  $region5: #{multi_head_attention.3} parent=0 // pred_fallthru
    _
  // Predicated region
  $region6: #{multi_head_attention.3} parent=0 // pred_check
    _
  $region7: #{multi_head_attention.3} parent=0 // pred_check_branch
    %11 = sbr.rel (0) target = $region9
  $region8: #{multi_head_attention.3} parent=0 // pred_region
    _
  $region9: #{multi_head_attention.3} parent=0 // pred_fallthru
    _
  // Predicated region
  $region10: #{multi_head_attention.3} parent=0 // pred_check
    _
  $region11: #{multi_head_attention.3} parent=0 // pred_check_branch
    %13 = sbr.rel (0) target = $region13
  $region12: #{multi_head_attention.3} parent=0 // pred_region
    _
  $region13: #{multi_head_attention.3} parent=0 // pred_fallthru
    _
  %p14 = scmp.eq.s32.totalorder 0, 0
  // Predicated region
  $region14: #{multi_head_attention.3} parent=0 // pred_check
    %p15 = pneg %p14
  $region15: #{multi_head_attention.3} parent=0 // pred_check_branch
    %17 = sbr.rel (%p15) target = $region17
  $region16: #{multi_head_attention.3} parent=0 // pred_region
    %vm18 = vcmask 785408
    %19 = vst.msk [vmem:[#allocation2] sm:$0xff] %vm18, 0.0
    %20 = vst.msk [vmem:[#allocation2 + $0x8] sm:$0xff] %vm18, 0.0
  $region17: #{multi_head_attention.3} parent=0 // pred_fallthru
    _
  %v21 = vld [vmem:[#allocation2] sm:$0xff]
  %v22 = vld [vmem:[#allocation2 + $0x8] sm:$0xff]
  %v23 = vld [vmem:[%s0] sm:$0xff]
  %v24 = vld [vmem:[%s0 + $0x8] sm:$0xff]
  %v25 = vld [vmem:[%s1] sm:$0xff]
  %v26 = vld [vmem:[%s1 + $0x8] sm:$0xff]
  %v27 = vld [vmem:[%s1 + $0x10] sm:$0xff]
  %v28 = vld [vmem:[%s1 + $0x18] sm:$0xff]
  %vm29 = vcmask 261120
  %v31 = vsel %vm29, %v23, 0
  %v34 = vsel %vm29, %v24, 0
  %36 = vmatprep.subr.mxu0 0.0
  %37 = vmatpush1.msra.mxu0 %v25
  %38 = vmatprep.subr.mxu0 0.0
  %39 = vmatpush1.msra.mxu0 %v26
  %40 = vmatprep.subr.mxu0 0.0
  %41 = vmatpush1.msra.mxu0 %v27
  %42 = vmatprep.subr.mxu0 0.0
  %43 = vmatpush1.msra.mxu0 %v28
  %44 = vmatprep.subr.mxu0 0.0
  %45 = vmatpush1.msra.mxu0 0.0
  %46 = vmatprep.subr.mxu0 0.0
  %47 = vmatpush1.msra.mxu0 0.0
  %48 = vmatprep.subr.mxu0 0.0
  %49 = vmatpush1.msra.mxu0 0.0
  %50 = vmatprep.subr.mxu0 0.0
  %51 = vmatpush1.msra.mxu0 0.0
  %52 = vmatprep.subr.mxu0 0.0
  %53 = vmatpush1.msra.mxu0 0.0
  %54 = vmatprep.subr.mxu0 0.0
  %55 = vmatpush1.msra.mxu0 0.0
  %56 = vmatprep.subr.mxu0 0.0
  %57 = vmatpush1.msra.mxu0 0.0
  %58 = vmatprep.subr.mxu0 0.0
  %59 = vmatpush1.msra.mxu0 0.0
  %60 = vmatprep.subr.mxu0 0.0
  %61 = vmatpush1.msra.mxu0 0.0
  %62 = vmatprep.subr.mxu0 0.0
  %63 = vmatpush1.msra.mxu0 0.0
  %64 = vmatprep.subr.mxu0 0.0
  %65 = vmatpush1.msra.mxu0 0.0
  %66 = vmatprep.subr.mxu0 0.0
  %67 = vmatpush1.msra.mxu0 0.0
  %68 = vmatprep.subr.mxu0 0.0
  %69 = vmatpush1.msra.mxu0 0.0
  %70 = vmatprep.subr.mxu0 0.0
  %71 = vmatpush1.msra.mxu0 0.0
  %72 = vmatprep.subr.mxu0 0.0
  %73 = vmatpush1.msra.mxu0 0.0
  %74 = vmatprep.subr.mxu0 0.0
  %75 = vmatpush1.msra.mxu0 0.0
  %76 = vmatprep.subr.mxu0 0.0
  %77 = vmatpush1.msra.mxu0 0.0
  %78 = vmatprep.subr.mxu0 0.0
  %79 = vmatpush1.msra.mxu0 0.0
  %80 = vmatprep.subr.mxu0 0.0
  %81 = vmatpush1.msra.mxu0 0.0
  %82 = vmatprep.subr.mxu0 0.0
  %83 = vmatpush1.msra.mxu0 0.0
  %84 = vmatprep.subr.mxu0 0.0
  %85 = vmatpush1.msra.mxu0 0.0
  %86 = vmatprep.subr.mxu0 0.0
  %87 = vmatpush1.msra.mxu0 0.0
  %88 = vmatprep.subr.mxu0 0.0
  %89 = vmatpush1.msra.mxu0 0.0
  %90 = vmatprep.subr.mxu0 0.0
  %91 = vmatpush1.msra.mxu0 0.0
  %92 = vmatprep.subr.mxu0 0.0
  %93 = vmatpush1.msra.mxu0 0.0
  %94 = vmatprep.subr.mxu0 0.0
  %95 = vmatpush1.msra.mxu0 0.0
  %96 = vmatprep.subr.mxu0 0.0
  %97 = vmatpush1.msra.mxu0 0.0
  %98 = vmatprep.subr.mxu0 0.0
  %99 = vmatpush1.msra.mxu0 0.0
  %100 = vmatprep.mubr.f32.mxu0 0.0
  %101 = vmatmul.mubr.f32.gmra.mrb[0].mxu0 %v31
  %v102 = vpop.f32.mrb[0].mxu0
  %v103 = vadd.f32 0.0, %v102
  %v104 = vpop.f32.mrb[0].mxu0
  %105 = vmatprep.mubr.f32.mxu0 0.0
  %106 = vmatmul.mubr.f32.gmra.mrb[0].mxu0 %v34
  %v107 = vpop.f32.mrb[0].mxu0
  %v108 = vadd.f32 0.0, %v107
  %v109 = vpop.f32.mrb[0].mxu0
  %110 = vdwg.mxu0
  %v111 = vadd.f32 %v21, %v103
  %v112 = vadd.f32 %v22, %v108
  %vm113 = vcmask 785408
  %114 = vst.msk [vmem:[#allocation2] sm:$0xff] %vm113, %v111
  %115 = vst.msk [vmem:[#allocation2 + $0x8] sm:$0xff] %vm113, %v112
  // Predicated region
  $region18: #{multi_head_attention.3} parent=0 // pred_check
    %p116 = pneg %p14
  $region19: #{multi_head_attention.3} parent=0 // pred_check_branch
    %118 = sbr.rel (%p116) target = $region21
  $region20: #{multi_head_attention.3} parent=0 // pred_region
    %v119 = vld [vmem:[#allocation2] sm:$0xff]
    %v120 = vld [vmem:[#allocation2 + $0x8] sm:$0xff]
    %v121 = vld [vmem:[%s2] sm:$0x1]
    %v123 = vlaneseq
    %v124 = vshrl.u32 %v123, 7
    %v125 = vsub.s32 0, %v124
    %v126 = vrot.slane %v121, %v125
    %v128 = vadd.f32 %v119, %v126
    %v129 = vadd.f32 %v120, %v126
    %130 = vst.msk [vmem:[%s3] sm:$0xff] %vm113, %v128
    %131 = vst.msk [vmem:[%s3 + $0x8] sm:$0xff] %vm113, %v129
  $region21: #{multi_head_attention.3} parent=0 // pred_fallthru
    _
  // Predicated region
  $region22: #{multi_head_attention.3} parent=0 // pred_check
    _
  $region23: #{multi_head_attention.3} parent=0 // pred_check_branch
    %133 = sbr.rel (0) target = $region25
  $region24: #{multi_head_attention.3} parent=0 // pred_region
    _
  $region25: #{multi_head_attention.3} parent=0 // pred_fallthru
    _
  // Predicated region
  $region26: #{multi_head_attention.3} parent=0 // pred_check
    _
  $region27: #{multi_head_attention.3} parent=0 // pred_check_branch
    %135 = sbr.rel (0) target = $region29
  $region28: #{multi_head_attention.3} parent=0 // pred_region
    _
  $region29: #{multi_head_attention.3} parent=0 // pred_fallthru
    _

// kernel: multi_head_attention.4
$region0: #{multi_head_attention.4}
  #allocation0 [shape = 'u32[]', space=smem, size = 0x4, offset = 0x4, fixed_abs, tag = 'smem constant byte address 0x4 - core index']
  #allocation1 [shape = 'u32[144,128]{1,0:T(1,128)}', space=vmem, size = 0x12000, scoped, tag = 'internal scratch']
  %s0 = inlined_call_operand.vmem [shape: f32[2,8,96], index: 0, kind: input, shape index: {}]
  %s1 = inlined_call_operand.vmem [shape: f32[2,8,32], index: 1, kind: output, shape index: {}]
  %s2 = sld [smem:[#allocation0]]
  $region37: #{multi_head_attention.4} parent=0
    _
  %s4 = ssub.s32 1, %s2
  %s5 = scalar_select 0, %s4, %s2
  loop: start=0, step=1, limit=4
  $region2: #{multi_head_attention.4} parent=0 // loop_pre_header
    _
  $region3: #{multi_head_attention.4} parent=0 // loop_header
    %s7 = sphi 0, %s11
    %p8 = scmp.ge.s32.totalorder %s7, 4
    %s17 = sphi 0, %s19
    %s20 = sphi 0, %s17
    %s21 = sphi 0, %s20
    %s37 = sphi 0, %s21
    %s43 = sphi 0, %s45
    %s46 = sphi 0, %s43
    %s47 = sphi 0, %s46
    %s63 = sphi 0, %s47
  $region4: #{multi_head_attention.4} parent=0 // loop_header_branch
    %10 = sbr.rel (%p8) target = $region8
  $region5: #{multi_head_attention.4} parent=0 // loop_body
    %s12 = ssub.s32 %s7, 1
    %s13 = ssub.s32 %s7, 2
    %s14 = sadd.s32 %s7, 1
    %s15 = ssub.s32 %s7, %s14
    %p16 = scmp.eq.s32.totalorder %s15, 0
    %s18 = sadd.s32 %s17, 1
    %s19 = scalar_select %p16, %s17, %s18
    %p22 = pneg %p16
    %p23 = scmp.eq.s32.totalorder %s7, 1
    %p24 = por %p22, %p23
    %p25 = scmp.ne.s32.totalorder %s17, %s20
    %p26 = scmp.eq.s32.totalorder %s7, 0
    %p27 = por %p25, %p26
    %p28 = scmp.ne.s32.totalorder %s17, %s20
    %p29 = scmp.eq.s32.totalorder %s12, 1
    %p30 = por %p28, %p29
    %p31 = scmp.ne.s32.totalorder %s20, %s21
    %p32 = scmp.eq.s32.totalorder %s12, 0
    %p33 = por %p31, %p32
    %p34 = scmp.ne.s32.totalorder %s20, %s21
    %p35 = scmp.eq.s32.totalorder %s13, 1
    %p36 = por %p34, %p35
    %p38 = scmp.ne.s32.totalorder %s21, %s37
    %p39 = scmp.eq.s32.totalorder %s13, 0
    %p40 = por %p38, %p39
    %s41 = ssub.s32 %s7, %s14
    %p42 = scmp.eq.s32.totalorder %s41, 0
    %s44 = sadd.s32 %s43, 1
    %s45 = scalar_select %p42, %s43, %s44
    %p48 = pneg %p42
    %p49 = scmp.eq.s32.totalorder %s7, 1
    %p50 = por %p48, %p49
    %p51 = scmp.ne.s32.totalorder %s43, %s46
    %p52 = scmp.eq.s32.totalorder %s7, 0
    %p53 = por %p51, %p52
    %p54 = scmp.ne.s32.totalorder %s43, %s46
    %p55 = scmp.eq.s32.totalorder %s12, 1
    %p56 = por %p54, %p55
    %p57 = scmp.ne.s32.totalorder %s46, %s47
    %p58 = scmp.eq.s32.totalorder %s12, 0
    %p59 = por %p57, %p58
    %p60 = scmp.ne.s32.totalorder %s46, %s47
    %p61 = scmp.eq.s32.totalorder %s13, 1
    %p62 = por %p60, %p61
    %p64 = scmp.ne.s32.totalorder %s47, %s63
    %p65 = scmp.eq.s32.totalorder %s13, 0
    %p66 = por %p64, %p65
    %p67 = scmp.le.s32.totalorder 1, %s7
    %p68 = scmp.lt.s32.totalorder %s7, 3
    %p69 = pnand %p67, %p68
    %p70 = pneg %p69
    // Predicated region
    $region9: #{multi_head_attention.4} parent=5 // pred_check
      _
    $region10: #{multi_head_attention.4} parent=5 // pred_check_branch
      %72 = sbr.rel (%p69) target = $region12
    $region11: #{multi_head_attention.4} parent=5 // pred_region
      %s73 = ssub.s32 %s7, 1
    $region12: #{multi_head_attention.4} parent=5 // pred_fallthru
      _
    %p74 = scmp.lt.s32.totalorder %s7, 2
    // Predicated region
    $region13: #{multi_head_attention.4} parent=5 // pred_check
      %p75 = pneg %p74
    $region14: #{multi_head_attention.4} parent=5 // pred_check_branch
      %77 = sbr.rel (%p75) target = $region16
    $region15: #{multi_head_attention.4} parent=5 // pred_region
      // Predicated region
      $region17: #{multi_head_attention.4} parent=15 // pred_check
        %p78 = pneg %p27
      $region18: #{multi_head_attention.4} parent=15 // pred_check_branch
        %80 = sbr.rel (%p78) target = $region20
      $region19: #{multi_head_attention.4} parent=15 // pred_region
        %p81 = scmp.lt.s32.totalorder %s7, 1
        %s82 = scalar_select %p81, %s7, 1
        %s83 = smul.addr %s82, 8
        %s84 = scalar_lea.vmem %s0, %s83
      $region20: #{multi_head_attention.4} parent=15 // pred_fallthru
        _
    $region16: #{multi_head_attention.4} parent=5 // pred_fallthru
      _
    %p85 = scmp.le.s32.totalorder 1, %s7
    %p86 = scmp.lt.s32.totalorder %s7, 3
    %p87 = pnand %p85, %p86
    %p88 = pneg %p87
    // Predicated region
    $region21: #{multi_head_attention.4} parent=5 // pred_check
      _
    $region22: #{multi_head_attention.4} parent=5 // pred_check_branch
      %90 = sbr.rel (%p87) target = $region24
    $region23: #{multi_head_attention.4} parent=5 // pred_region
      %s91 = ssub.s32 %s7, 1
      %p92 = scmp.lt.s32.totalorder %s12, 1
      %s93 = scalar_select %p92, %s12, 1
      %s94 = smul.addr %s93, 8
      %s95 = scalar_lea.vmem %s0, %s94
      %p96 = pneg %p33
      %p97 = pneg %p30
      %p98 = pneg %p59
      %p99 = pneg %p56
      %p100 = scmp.lt.s32.totalorder %s12, 1
      %s101 = scalar_select %p100, %s12, 1
      %s102 = smul.addr %s101, 8
      %s103 = scalar_lea.vmem %s1, %s102
      %p104 = scmp.lt.s32.totalorder %s12, 1
      %s105 = scalar_select %p104, %s12, 1
      %s106 = smul.addr %s105, 8
      %s107 = scalar_lea.vmem %s0, %s106
      %p108 = scmp.lt.s32.totalorder %s12, 1
      %s109 = scalar_select %p108, %s12, 1
      %s110 = smul.addr %s109, 8
      %s111 = scalar_lea.vmem %s1, %s110
      %v112 = vld [vmem:[%s107] sm:$0xff]
      %v113 = vmul.f32 %v112, 0.35355338
      %115 = vrot.lane.b32.xlu0 %v112, 96
      %v116 = vpop.permute.xlu0 %115
      %vm117 = vcmask 64512
      %v119 = vsel %vm117, %v113, 0
      %v121 = vsel %vm117, %v116, 0
      %123 = vmatprep.subr.mxu0 0.0
      %124 = vmatpush1.xpose.msra.mxu0 %v121
      %125 = vmatprep.subr.mxu0 0.0
      %126 = vmatpush1.xpose.msra.mxu0 0.0
      %127 = vmatprep.subr.mxu0 0.0
      %128 = vmatpush1.xpose.msra.mxu0 0.0
      %129 = vmatprep.subr.mxu0 0.0
      %130 = vmatpush1.xpose.msra.mxu0 0.0
      %131 = vmatprep.subr.mxu0 0.0
      %132 = vmatpush1.xpose.msra.mxu0 0.0
      %133 = vmatprep.subr.mxu0 0.0
      %134 = vmatpush1.xpose.msra.mxu0 0.0
      %135 = vmatprep.subr.mxu0 0.0
      %136 = vmatpush1.xpose.msra.mxu0 0.0
      %137 = vmatprep.subr.mxu0 0.0
      %138 = vmatpush1.xpose.msra.mxu0 0.0
      %139 = vmatprep.subr.mxu0 0.0
      %140 = vmatpush1.xpose.msra.mxu0 0.0
      %141 = vmatprep.subr.mxu0 0.0
      %142 = vmatpush1.xpose.msra.mxu0 0.0
      %143 = vmatprep.subr.mxu0 0.0
      %144 = vmatpush1.xpose.msra.mxu0 0.0
      %145 = vmatprep.subr.mxu0 0.0
      %146 = vmatpush1.xpose.msra.mxu0 0.0
      %147 = vmatprep.subr.mxu0 0.0
      %148 = vmatpush1.xpose.msra.mxu0 0.0
      %149 = vmatprep.subr.mxu0 0.0
      %150 = vmatpush1.xpose.msra.mxu0 0.0
      %151 = vmatprep.subr.mxu0 0.0
      %152 = vmatpush1.xpose.msra.mxu0 0.0
      %153 = vmatprep.subr.mxu0 0.0
      %154 = vmatpush1.xpose.msra.mxu0 0.0
      %155 = vmatprep.subr.mxu0 0.0
      %156 = vmatpush1.xpose.msra.mxu0 0.0
      %157 = vmatprep.subr.mxu0 0.0
      %158 = vmatpush1.xpose.msra.mxu0 0.0
      %159 = vmatprep.subr.mxu0 0.0
      %160 = vmatpush1.xpose.msra.mxu0 0.0
      %161 = vmatprep.subr.mxu0 0.0
      %162 = vmatpush1.xpose.msra.mxu0 0.0
      %163 = vmatprep.subr.mxu0 0.0
      %164 = vmatpush1.xpose.msra.mxu0 0.0
      %165 = vmatprep.subr.mxu0 0.0
      %166 = vmatpush1.xpose.msra.mxu0 0.0
      %167 = vmatprep.subr.mxu0 0.0
      %168 = vmatpush1.xpose.msra.mxu0 0.0
      %169 = vmatprep.subr.mxu0 0.0
      %170 = vmatpush1.xpose.msra.mxu0 0.0
      %171 = vmatprep.subr.mxu0 0.0
      %172 = vmatpush1.xpose.msra.mxu0 0.0
      %173 = vmatprep.subr.mxu0 0.0
      %174 = vmatpush1.xpose.msra.mxu0 0.0
      %175 = vmatprep.subr.mxu0 0.0
      %176 = vmatpush1.xpose.msra.mxu0 0.0
      %177 = vmatprep.subr.mxu0 0.0
      %178 = vmatpush1.xpose.msra.mxu0 0.0
      %179 = vmatprep.subr.mxu0 0.0
      %180 = vmatpush1.xpose.msra.mxu0 0.0
      %181 = vmatprep.subr.mxu0 0.0
      %182 = vmatpush1.xpose.msra.mxu0 0.0
      %183 = vmatprep.subr.mxu0 0.0
      %184 = vmatpush1.xpose.msra.mxu0 0.0
      %185 = vmatprep.subr.mxu0 0.0
      %186 = vmatpush1.xpose.msra.mxu0 0.0
      %187 = vmatprep.mubr.f32.mxu0 0.0
      %188 = vmatmul.mubr.f32.gmra.mrb[0].mxu0 %v119
      %v189 = vpop.f32.mrb[0].mxu0
      %v190 = vadd.f32 0.0, %v189
      %v191 = vpop.f32.mrb[0].mxu0
      %192 = vdwg.mxu0
      %v193 = vsel %vm117, %v190, -inf
      %194 = vmax.xlane.f32.xlu0 %v193
      %v195 = vpop.xlane.xlu0 %194
      %v196 = vsub.f32 %v190, %v195
      %v197 = vmul.f32 %v196, 1.442695
      %v198 = vpow.pop %v197
      %v199 = vsel %vm117, %v198, 0.0
      %200 = vadd.xlane.f32.xlu0 %v199
      %v201 = vpop.xlane.xlu0 %200
      %v202 = vrcp.pop %v201
      %v203 = vmul.f32 %v198, %v202
      %204 = vrot.lane.b32.xlu0 %v112, 64
      %v205 = vpop.permute.xlu0 %204
      %v208 = vsel %vm117, %v203, 0
      %210 = vmatprep.subr.mxu0 0.0
      %211 = vmatpush1.msra.mxu0 %v205
      %212 = vmatprep.subr.mxu0 0.0
      %213 = vmatpush1.msra.mxu0 0.0
      %214 = vmatprep.subr.mxu0 0.0
      %215 = vmatpush1.msra.mxu0 0.0
      %216 = vmatprep.subr.mxu0 0.0
      %217 = vmatpush1.msra.mxu0 0.0
      %218 = vmatprep.subr.mxu0 0.0
      %219 = vmatpush1.msra.mxu0 0.0
      %220 = vmatprep.subr.mxu0 0.0
      %221 = vmatpush1.msra.mxu0 0.0
      %222 = vmatprep.subr.mxu0 0.0
      %223 = vmatpush1.msra.mxu0 0.0
      %224 = vmatprep.subr.mxu0 0.0
      %225 = vmatpush1.msra.mxu0 0.0
      %226 = vmatprep.subr.mxu0 0.0
      %227 = vmatpush1.msra.mxu0 0.0
      %228 = vmatprep.subr.mxu0 0.0
      %229 = vmatpush1.msra.mxu0 0.0
      %230 = vmatprep.subr.mxu0 0.0
      %231 = vmatpush1.msra.mxu0 0.0
      %232 = vmatprep.subr.mxu0 0.0
      %233 = vmatpush1.msra.mxu0 0.0
      %234 = vmatprep.subr.mxu0 0.0
      %235 = vmatpush1.msra.mxu0 0.0
      %236 = vmatprep.subr.mxu0 0.0
      %237 = vmatpush1.msra.mxu0 0.0
      %238 = vmatprep.subr.mxu0 0.0
      %239 = vmatpush1.msra.mxu0 0.0
      %240 = vmatprep.subr.mxu0 0.0
      %241 = vmatpush1.msra.mxu0 0.0
      %242 = vmatprep.subr.mxu0 0.0
      %243 = vmatpush1.msra.mxu0 0.0
      %244 = vmatprep.subr.mxu0 0.0
      %245 = vmatpush1.msra.mxu0 0.0
      %246 = vmatprep.subr.mxu0 0.0
      %247 = vmatpush1.msra.mxu0 0.0
      %248 = vmatprep.subr.mxu0 0.0
      %249 = vmatpush1.msra.mxu0 0.0
      %250 = vmatprep.subr.mxu0 0.0
      %251 = vmatpush1.msra.mxu0 0.0
      %252 = vmatprep.subr.mxu0 0.0
      %253 = vmatpush1.msra.mxu0 0.0
      %254 = vmatprep.subr.mxu0 0.0
      %255 = vmatpush1.msra.mxu0 0.0
      %256 = vmatprep.subr.mxu0 0.0
      %257 = vmatpush1.msra.mxu0 0.0
      %258 = vmatprep.subr.mxu0 0.0
      %259 = vmatpush1.msra.mxu0 0.0
      %260 = vmatprep.subr.mxu0 0.0
      %261 = vmatpush1.msra.mxu0 0.0
      %262 = vmatprep.subr.mxu0 0.0
      %263 = vmatpush1.msra.mxu0 0.0
      %264 = vmatprep.subr.mxu0 0.0
      %265 = vmatpush1.msra.mxu0 0.0
      %266 = vmatprep.subr.mxu0 0.0
      %267 = vmatpush1.msra.mxu0 0.0
      %268 = vmatprep.subr.mxu0 0.0
      %269 = vmatpush1.msra.mxu0 0.0
      %270 = vmatprep.subr.mxu0 0.0
      %271 = vmatpush1.msra.mxu0 0.0
      %272 = vmatprep.subr.mxu0 0.0
      %273 = vmatpush1.msra.mxu0 0.0
      %274 = vmatprep.mubr.f32.mxu0 0.0
      %275 = vmatmul.mubr.f32.gmra.mrb[0].mxu0 %v208
      %v276 = vpop.f32.mrb[0].mxu0
      %v277 = vadd.f32 0.0, %v276
      %v278 = vpop.f32.mrb[0].mxu0
      %279 = vdwg.mxu0
      %280 = vrot.lane.b32.xlu0 %v113, 120
      %v281 = vpop.permute.xlu0 %280
      %282 = vrot.lane.b32.xlu0 %v112, 88
      %v283 = vpop.permute.xlu0 %282
      %v284 = vsel %vm117, %v281, 0
      %v286 = vsel %vm117, %v283, 0
      %288 = vmatprep.subr.mxu0 0.0
      %289 = vmatpush1.xpose.msra.mxu0 %v286
      %290 = vmatprep.subr.mxu0 0.0
      %291 = vmatpush1.xpose.msra.mxu0 0.0
      %292 = vmatprep.subr.mxu0 0.0
      %293 = vmatpush1.xpose.msra.mxu0 0.0
      %294 = vmatprep.subr.mxu0 0.0
      %295 = vmatpush1.xpose.msra.mxu0 0.0
      %296 = vmatprep.subr.mxu0 0.0
      %297 = vmatpush1.xpose.msra.mxu0 0.0
      %298 = vmatprep.subr.mxu0 0.0
      %299 = vmatpush1.xpose.msra.mxu0 0.0
      %300 = vmatprep.subr.mxu0 0.0
      %301 = vmatpush1.xpose.msra.mxu0 0.0
      %302 = vmatprep.subr.mxu0 0.0
      %303 = vmatpush1.xpose.msra.mxu0 0.0
      %304 = vmatprep.subr.mxu0 0.0
      %305 = vmatpush1.xpose.msra.mxu0 0.0
      %306 = vmatprep.subr.mxu0 0.0
      %307 = vmatpush1.xpose.msra.mxu0 0.0
      %308 = vmatprep.subr.mxu0 0.0
      %309 = vmatpush1.xpose.msra.mxu0 0.0
      %310 = vmatprep.subr.mxu0 0.0
      %311 = vmatpush1.xpose.msra.mxu0 0.0
      %312 = vmatprep.subr.mxu0 0.0
      %313 = vmatpush1.xpose.msra.mxu0 0.0
      %314 = vmatprep.subr.mxu0 0.0
      %315 = vmatpush1.xpose.msra.mxu0 0.0
      %316 = vmatprep.subr.mxu0 0.0
      %317 = vmatpush1.xpose.msra.mxu0 0.0
      %318 = vmatprep.subr.mxu0 0.0
      %319 = vmatpush1.xpose.msra.mxu0 0.0
      %320 = vmatprep.subr.mxu0 0.0
      %321 = vmatpush1.xpose.msra.mxu0 0.0
      %322 = vmatprep.subr.mxu0 0.0
      %323 = vmatpush1.xpose.msra.mxu0 0.0
      %324 = vmatprep.subr.mxu0 0.0
      %325 = vmatpush1.xpose.msra.mxu0 0.0
      %326 = vmatprep.subr.mxu0 0.0
      %327 = vmatpush1.xpose.msra.mxu0 0.0
      %328 = vmatprep.subr.mxu0 0.0
      %329 = vmatpush1.xpose.msra.mxu0 0.0
      %330 = vmatprep.subr.mxu0 0.0
      %331 = vmatpush1.xpose.msra.mxu0 0.0
      %332 = vmatprep.subr.mxu0 0.0
      %333 = vmatpush1.xpose.msra.mxu0 0.0
      %334 = vmatprep.subr.mxu0 0.0
      %335 = vmatpush1.xpose.msra.mxu0 0.0
      %336 = vmatprep.subr.mxu0 0.0
      %337 = vmatpush1.xpose.msra.mxu0 0.0
      %338 = vmatprep.subr.mxu0 0.0
      %339 = vmatpush1.xpose.msra.mxu0 0.0
      %340 = vmatprep.subr.mxu0 0.0
      %341 = vmatpush1.xpose.msra.mxu0 0.0
      %342 = vmatprep.subr.mxu0 0.0
      %343 = vmatpush1.xpose.msra.mxu0 0.0
      %344 = vmatprep.subr.mxu0 0.0
      %345 = vmatpush1.xpose.msra.mxu0 0.0
      %346 = vmatprep.subr.mxu0 0.0
      %347 = vmatpush1.xpose.msra.mxu0 0.0
      %348 = vmatprep.subr.mxu0 0.0
      %349 = vmatpush1.xpose.msra.mxu0 0.0
      %350 = vmatprep.subr.mxu0 0.0
      %351 = vmatpush1.xpose.msra.mxu0 0.0
      %352 = vmatprep.mubr.f32.mxu0 0.0
      %353 = vmatmul.mubr.f32.gmra.mrb[0].mxu0 %v284
      %v354 = vpop.f32.mrb[0].mxu0
      %v355 = vadd.f32 0.0, %v354
      %v356 = vpop.f32.mrb[0].mxu0
      %357 = vdwg.mxu0
      %v358 = vsel %vm117, %v355, -inf
      %359 = vmax.xlane.f32.xlu0 %v358
      %v360 = vpop.xlane.xlu0 %359
      %v361 = vsub.f32 %v355, %v360
      %v362 = vmul.f32 %v361, 1.442695
      %v363 = vpow.pop %v362
      %v364 = vsel %vm117, %v363, 0.0
      %365 = vadd.xlane.f32.xlu0 %v364
      %v366 = vpop.xlane.xlu0 %365
      %v367 = vrcp.pop %v366
      %v368 = vmul.f32 %v363, %v367
      %369 = vrot.lane.b32.xlu0 %v112, 56
      %v370 = vpop.permute.xlu0 %369
      %v373 = vsel %vm117, %v368, 0
      %375 = vmatprep.subr.mxu0 0.0
      %376 = vmatpush1.msra.mxu0 %v370
      %377 = vmatprep.subr.mxu0 0.0
      %378 = vmatpush1.msra.mxu0 0.0
      %379 = vmatprep.subr.mxu0 0.0
      %380 = vmatpush1.msra.mxu0 0.0
      %381 = vmatprep.subr.mxu0 0.0
      %382 = vmatpush1.msra.mxu0 0.0
      %383 = vmatprep.subr.mxu0 0.0
      %384 = vmatpush1.msra.mxu0 0.0
      %385 = vmatprep.subr.mxu0 0.0
      %386 = vmatpush1.msra.mxu0 0.0
      %387 = vmatprep.subr.mxu0 0.0
      %388 = vmatpush1.msra.mxu0 0.0
      %389 = vmatprep.subr.mxu0 0.0
      %390 = vmatpush1.msra.mxu0 0.0
      %391 = vmatprep.subr.mxu0 0.0
      %392 = vmatpush1.msra.mxu0 0.0
      %393 = vmatprep.subr.mxu0 0.0
      %394 = vmatpush1.msra.mxu0 0.0
      %395 = vmatprep.subr.mxu0 0.0
      %396 = vmatpush1.msra.mxu0 0.0
      %397 = vmatprep.subr.mxu0 0.0
      %398 = vmatpush1.msra.mxu0 0.0
      %399 = vmatprep.subr.mxu0 0.0
      %400 = vmatpush1.msra.mxu0 0.0
      %401 = vmatprep.subr.mxu0 0.0
      %402 = vmatpush1.msra.mxu0 0.0
      %403 = vmatprep.subr.mxu0 0.0
      %404 = vmatpush1.msra.mxu0 0.0
      %405 = vmatprep.subr.mxu0 0.0
      %406 = vmatpush1.msra.mxu0 0.0
      %407 = vmatprep.subr.mxu0 0.0
      %408 = vmatpush1.msra.mxu0 0.0
      %409 = vmatprep.subr.mxu0 0.0
      %410 = vmatpush1.msra.mxu0 0.0
      %411 = vmatprep.subr.mxu0 0.0
      %412 = vmatpush1.msra.mxu0 0.0
      %413 = vmatprep.subr.mxu0 0.0
      %414 = vmatpush1.msra.mxu0 0.0
      %415 = vmatprep.subr.mxu0 0.0
      %416 = vmatpush1.msra.mxu0 0.0
      %417 = vmatprep.subr.mxu0 0.0
      %418 = vmatpush1.msra.mxu0 0.0
      %419 = vmatprep.subr.mxu0 0.0
      %420 = vmatpush1.msra.mxu0 0.0
      %421 = vmatprep.subr.mxu0 0.0
      %422 = vmatpush1.msra.mxu0 0.0
      %423 = vmatprep.subr.mxu0 0.0
      %424 = vmatpush1.msra.mxu0 0.0
      %425 = vmatprep.subr.mxu0 0.0
      %426 = vmatpush1.msra.mxu0 0.0
      %427 = vmatprep.subr.mxu0 0.0
      %428 = vmatpush1.msra.mxu0 0.0
      %429 = vmatprep.subr.mxu0 0.0
      %430 = vmatpush1.msra.mxu0 0.0
      %431 = vmatprep.subr.mxu0 0.0
      %432 = vmatpush1.msra.mxu0 0.0
      %433 = vmatprep.subr.mxu0 0.0
      %434 = vmatpush1.msra.mxu0 0.0
      %435 = vmatprep.subr.mxu0 0.0
      %436 = vmatpush1.msra.mxu0 0.0
      %437 = vmatprep.subr.mxu0 0.0
      %438 = vmatpush1.msra.mxu0 0.0
      %439 = vmatprep.mubr.f32.mxu0 0.0
      %440 = vmatmul.mubr.f32.gmra.mrb[0].mxu0 %v373
      %v441 = vpop.f32.mrb[0].mxu0
      %v442 = vadd.f32 0.0, %v441
      %v443 = vpop.f32.mrb[0].mxu0
      %444 = vdwg.mxu0
      %445 = vrot.lane.b32.xlu0 %v113, 112
      %v446 = vpop.permute.xlu0 %445
      %447 = vrot.lane.b32.xlu0 %v112, 80
      %v448 = vpop.permute.xlu0 %447
      %v449 = vsel %vm117, %v446, 0
      %v451 = vsel %vm117, %v448, 0
      %453 = vmatprep.subr.mxu0 0.0
      %454 = vmatpush1.xpose.msra.mxu0 %v451
      %455 = vmatprep.subr.mxu0 0.0
      %456 = vmatpush1.xpose.msra.mxu0 0.0
      %457 = vmatprep.subr.mxu0 0.0
      %458 = vmatpush1.xpose.msra.mxu0 0.0
      %459 = vmatprep.subr.mxu0 0.0
      %460 = vmatpush1.xpose.msra.mxu0 0.0
      %461 = vmatprep.subr.mxu0 0.0
      %462 = vmatpush1.xpose.msra.mxu0 0.0
      %463 = vmatprep.subr.mxu0 0.0
      %464 = vmatpush1.xpose.msra.mxu0 0.0
      %465 = vmatprep.subr.mxu0 0.0
      %466 = vmatpush1.xpose.msra.mxu0 0.0
      %467 = vmatprep.subr.mxu0 0.0
      %468 = vmatpush1.xpose.msra.mxu0 0.0
      %469 = vmatprep.subr.mxu0 0.0
      %470 = vmatpush1.xpose.msra.mxu0 0.0
      %471 = vmatprep.subr.mxu0 0.0
      %472 = vmatpush1.xpose.msra.mxu0 0.0
      %473 = vmatprep.subr.mxu0 0.0
      %474 = vmatpush1.xpose.msra.mxu0 0.0
      %475 = vmatprep.subr.mxu0 0.0
      %476 = vmatpush1.xpose.msra.mxu0 0.0
      %477 = vmatprep.subr.mxu0 0.0
      %478 = vmatpush1.xpose.msra.mxu0 0.0
      %479 = vmatprep.subr.mxu0 0.0
      %480 = vmatpush1.xpose.msra.mxu0 0.0
      %481 = vmatprep.subr.mxu0 0.0
      %482 = vmatpush1.xpose.msra.mxu0 0.0
      %483 = vmatprep.subr.mxu0 0.0
      %484 = vmatpush1.xpose.msra.mxu0 0.0
      %485 = vmatprep.subr.mxu0 0.0
      %486 = vmatpush1.xpose.msra.mxu0 0.0
      %487 = vmatprep.subr.mxu0 0.0
      %488 = vmatpush1.xpose.msra.mxu0 0.0
      %489 = vmatprep.subr.mxu0 0.0
      %490 = vmatpush1.xpose.msra.mxu0 0.0
      %491 = vmatprep.subr.mxu0 0.0
      %492 = vmatpush1.xpose.msra.mxu0 0.0
      %493 = vmatprep.subr.mxu0 0.0
      %494 = vmatpush1.xpose.msra.mxu0 0.0
      %495 = vmatprep.subr.mxu0 0.0
      %496 = vmatpush1.xpose.msra.mxu0 0.0
      %497 = vmatprep.subr.mxu0 0.0
      %498 = vmatpush1.xpose.msra.mxu0 0.0
      %499 = vmatprep.subr.mxu0 0.0
      %500 = vmatpush1.xpose.msra.mxu0 0.0
      %501 = vmatprep.subr.mxu0 0.0
      %502 = vmatpush1.xpose.msra.mxu0 0.0
      %503 = vmatprep.subr.mxu0 0.0
      %504 = vmatpush1.xpose.msra.mxu0 0.0
      %505 = vmatprep.subr.mxu0 0.0
      %506 = vmatpush1.xpose.msra.mxu0 0.0
      %507 = vmatprep.subr.mxu0 0.0
      %508 = vmatpush1.xpose.msra.mxu0 0.0
      %509 = vmatprep.subr.mxu0 0.0
      %510 = vmatpush1.xpose.msra.mxu0 0.0
      %511 = vmatprep.subr.mxu0 0.0
      %512 = vmatpush1.xpose.msra.mxu0 0.0
      %513 = vmatprep.subr.mxu0 0.0
      %514 = vmatpush1.xpose.msra.mxu0 0.0
      %515 = vmatprep.subr.mxu0 0.0
      %516 = vmatpush1.xpose.msra.mxu0 0.0
      %517 = vmatprep.mubr.f32.mxu0 0.0
      %518 = vmatmul.mubr.f32.gmra.mrb[0].mxu0 %v449
      %v519 = vpop.f32.mrb[0].mxu0
      %v520 = vadd.f32 0.0, %v519
      %v521 = vpop.f32.mrb[0].mxu0
      %522 = vdwg.mxu0
      %v523 = vsel %vm117, %v520, -inf
      %524 = vmax.xlane.f32.xlu0 %v523
      %v525 = vpop.xlane.xlu0 %524
      %v526 = vsub.f32 %v520, %v525
      %v527 = vmul.f32 %v526, 1.442695
      %v528 = vpow.pop %v527
      %v529 = vsel %vm117, %v528, 0.0
      %530 = vadd.xlane.f32.xlu0 %v529
      %v531 = vpop.xlane.xlu0 %530
      %v532 = vrcp.pop %v531
      %v533 = vmul.f32 %v528, %v532
      %534 = vrot.lane.b32.xlu0 %v112, 48
      %v535 = vpop.permute.xlu0 %534
      %v538 = vsel %vm117, %v533, 0
      %540 = vmatprep.subr.mxu0 0.0
      %541 = vmatpush1.msra.mxu0 %v535
      %542 = vmatprep.subr.mxu0 0.0
      %543 = vmatpush1.msra.mxu0 0.0
      %544 = vmatprep.subr.mxu0 0.0
      %545 = vmatpush1.msra.mxu0 0.0
      %546 = vmatprep.subr.mxu0 0.0
      %547 = vmatpush1.msra.mxu0 0.0
      %548 = vmatprep.subr.mxu0 0.0
      %549 = vmatpush1.msra.mxu0 0.0
      %550 = vmatprep.subr.mxu0 0.0
      %551 = vmatpush1.msra.mxu0 0.0
      %552 = vmatprep.subr.mxu0 0.0
      %553 = vmatpush1.msra.mxu0 0.0
      %554 = vmatprep.subr.mxu0 0.0
      %555 = vmatpush1.msra.mxu0 0.0
      %556 = vmatprep.subr.mxu0 0.0
      %557 = vmatpush1.msra.mxu0 0.0
      %558 = vmatprep.subr.mxu0 0.0
      %559 = vmatpush1.msra.mxu0 0.0
      %560 = vmatprep.subr.mxu0 0.0
      %561 = vmatpush1.msra.mxu0 0.0
      %562 = vmatprep.subr.mxu0 0.0
      %563 = vmatpush1.msra.mxu0 0.0
      %564 = vmatprep.subr.mxu0 0.0
      %565 = vmatpush1.msra.mxu0 0.0
      %566 = vmatprep.subr.mxu0 0.0
      %567 = vmatpush1.msra.mxu0 0.0
      %568 = vmatprep.subr.mxu0 0.0
      %569 = vmatpush1.msra.mxu0 0.0
      %570 = vmatprep.subr.mxu0 0.0
      %571 = vmatpush1.msra.mxu0 0.0
      %572 = vmatprep.subr.mxu0 0.0
      %573 = vmatpush1.msra.mxu0 0.0
      %574 = vmatprep.subr.mxu0 0.0
      %575 = vmatpush1.msra.mxu0 0.0
      %576 = vmatprep.subr.mxu0 0.0
      %577 = vmatpush1.msra.mxu0 0.0
      %578 = vmatprep.subr.mxu0 0.0
      %579 = vmatpush1.msra.mxu0 0.0
      %580 = vmatprep.subr.mxu0 0.0
      %581 = vmatpush1.msra.mxu0 0.0
      %582 = vmatprep.subr.mxu0 0.0
      %583 = vmatpush1.msra.mxu0 0.0
      %584 = vmatprep.subr.mxu0 0.0
      %585 = vmatpush1.msra.mxu0 0.0
      %586 = vmatprep.subr.mxu0 0.0
      %587 = vmatpush1.msra.mxu0 0.0
      %588 = vmatprep.subr.mxu0 0.0
      %589 = vmatpush1.msra.mxu0 0.0
      %590 = vmatprep.subr.mxu0 0.0
      %591 = vmatpush1.msra.mxu0 0.0
      %592 = vmatprep.subr.mxu0 0.0
      %593 = vmatpush1.msra.mxu0 0.0
      %594 = vmatprep.subr.mxu0 0.0
      %595 = vmatpush1.msra.mxu0 0.0
      %596 = vmatprep.subr.mxu0 0.0
      %597 = vmatpush1.msra.mxu0 0.0
      %598 = vmatprep.subr.mxu0 0.0
      %599 = vmatpush1.msra.mxu0 0.0
      %600 = vmatprep.subr.mxu0 0.0
      %601 = vmatpush1.msra.mxu0 0.0
      %602 = vmatprep.subr.mxu0 0.0
      %603 = vmatpush1.msra.mxu0 0.0
      %604 = vmatprep.mubr.f32.mxu0 0.0
      %605 = vmatmul.mubr.f32.gmra.mrb[0].mxu0 %v538
      %v606 = vpop.f32.mrb[0].mxu0
      %v607 = vadd.f32 0.0, %v606
      %v608 = vpop.f32.mrb[0].mxu0
      %609 = vdwg.mxu0
      %610 = vrot.lane.b32.xlu0 %v113, 104
      %v611 = vpop.permute.xlu0 %610
      %612 = vrot.lane.b32.xlu0 %v112, 72
      %v613 = vpop.permute.xlu0 %612
      %v614 = vsel %vm117, %v611, 0
      %v616 = vsel %vm117, %v613, 0
      %618 = vmatprep.subr.mxu0 0.0
      %619 = vmatpush1.xpose.msra.mxu0 %v616
      %620 = vmatprep.subr.mxu0 0.0
      %621 = vmatpush1.xpose.msra.mxu0 0.0
      %622 = vmatprep.subr.mxu0 0.0
      %623 = vmatpush1.xpose.msra.mxu0 0.0
      %624 = vmatprep.subr.mxu0 0.0
      %625 = vmatpush1.xpose.msra.mxu0 0.0
      %626 = vmatprep.subr.mxu0 0.0
      %627 = vmatpush1.xpose.msra.mxu0 0.0
      %628 = vmatprep.subr.mxu0 0.0
      %629 = vmatpush1.xpose.msra.mxu0 0.0
      %630 = vmatprep.subr.mxu0 0.0
      %631 = vmatpush1.xpose.msra.mxu0 0.0
      %632 = vmatprep.subr.mxu0 0.0
      %633 = vmatpush1.xpose.msra.mxu0 0.0
      %634 = vmatprep.subr.mxu0 0.0
      %635 = vmatpush1.xpose.msra.mxu0 0.0
      %636 = vmatprep.subr.mxu0 0.0
      %637 = vmatpush1.xpose.msra.mxu0 0.0
      %638 = vmatprep.subr.mxu0 0.0
      %639 = vmatpush1.xpose.msra.mxu0 0.0
      %640 = vmatprep.subr.mxu0 0.0
      %641 = vmatpush1.xpose.msra.mxu0 0.0
      %642 = vmatprep.subr.mxu0 0.0
      %643 = vmatpush1.xpose.msra.mxu0 0.0
      %644 = vmatprep.subr.mxu0 0.0
      %645 = vmatpush1.xpose.msra.mxu0 0.0
      %646 = vmatprep.subr.mxu0 0.0
      %647 = vmatpush1.xpose.msra.mxu0 0.0
      %648 = vmatprep.subr.mxu0 0.0
      %649 = vmatpush1.xpose.msra.mxu0 0.0
      %650 = vmatprep.subr.mxu0 0.0
      %651 = vmatpush1.xpose.msra.mxu0 0.0
      %652 = vmatprep.subr.mxu0 0.0
      %653 = vmatpush1.xpose.msra.mxu0 0.0
      %654 = vmatprep.subr.mxu0 0.0
      %655 = vmatpush1.xpose.msra.mxu0 0.0
      %656 = vmatprep.subr.mxu0 0.0
      %657 = vmatpush1.xpose.msra.mxu0 0.0
      %658 = vmatprep.subr.mxu0 0.0
      %659 = vmatpush1.xpose.msra.mxu0 0.0
      %660 = vmatprep.subr.mxu0 0.0
      %661 = vmatpush1.xpose.msra.mxu0 0.0
      %662 = vmatprep.subr.mxu0 0.0
      %663 = vmatpush1.xpose.msra.mxu0 0.0
      %664 = vmatprep.subr.mxu0 0.0
      %665 = vmatpush1.xpose.msra.mxu0 0.0
      %666 = vmatprep.subr.mxu0 0.0
      %667 = vmatpush1.xpose.msra.mxu0 0.0
      %668 = vmatprep.subr.mxu0 0.0
      %669 = vmatpush1.xpose.msra.mxu0 0.0
      %670 = vmatprep.subr.mxu0 0.0
      %671 = vmatpush1.xpose.msra.mxu0 0.0
      %672 = vmatprep.subr.mxu0 0.0
      %673 = vmatpush1.xpose.msra.mxu0 0.0
      %674 = vmatprep.subr.mxu0 0.0
      %675 = vmatpush1.xpose.msra.mxu0 0.0
      %676 = vmatprep.subr.mxu0 0.0
      %677 = vmatpush1.xpose.msra.mxu0 0.0
      %678 = vmatprep.subr.mxu0 0.0
      %679 = vmatpush1.xpose.msra.mxu0 0.0
      %680 = vmatprep.subr.mxu0 0.0
      %681 = vmatpush1.xpose.msra.mxu0 0.0
      %682 = vmatprep.mubr.f32.mxu0 0.0
      %683 = vmatmul.mubr.f32.gmra.mrb[0].mxu0 %v614
      %v684 = vpop.f32.mrb[0].mxu0
      %v685 = vadd.f32 0.0, %v684
      %v686 = vpop.f32.mrb[0].mxu0
      %687 = vdwg.mxu0
      %v688 = vsel %vm117, %v685, -inf
      %689 = vmax.xlane.f32.xlu0 %v688
      %v690 = vpop.xlane.xlu0 %689
      %v691 = vsub.f32 %v685, %v690
      %v692 = vmul.f32 %v691, 1.442695
      %v693 = vpow.pop %v692
      %v694 = vsel %vm117, %v693, 0.0
      %695 = vadd.xlane.f32.xlu0 %v694
      %v696 = vpop.xlane.xlu0 %695
      %v697 = vrcp.pop %v696
      %v698 = vmul.f32 %v693, %v697
      %699 = vrot.lane.b32.xlu0 %v112, 40
      %v700 = vpop.permute.xlu0 %699
      %v703 = vsel %vm117, %v698, 0
      %705 = vmatprep.subr.mxu0 0.0
      %706 = vmatpush1.msra.mxu0 %v700
      %707 = vmatprep.subr.mxu0 0.0
      %708 = vmatpush1.msra.mxu0 0.0
      %709 = vmatprep.subr.mxu0 0.0
      %710 = vmatpush1.msra.mxu0 0.0
      %711 = vmatprep.subr.mxu0 0.0
      %712 = vmatpush1.msra.mxu0 0.0
      %713 = vmatprep.subr.mxu0 0.0
      %714 = vmatpush1.msra.mxu0 0.0
      %715 = vmatprep.subr.mxu0 0.0
      %716 = vmatpush1.msra.mxu0 0.0
      %717 = vmatprep.subr.mxu0 0.0
      %718 = vmatpush1.msra.mxu0 0.0
      %719 = vmatprep.subr.mxu0 0.0
      %720 = vmatpush1.msra.mxu0 0.0
      %721 = vmatprep.subr.mxu0 0.0
      %722 = vmatpush1.msra.mxu0 0.0
      %723 = vmatprep.subr.mxu0 0.0
      %724 = vmatpush1.msra.mxu0 0.0
      %725 = vmatprep.subr.mxu0 0.0
      %726 = vmatpush1.msra.mxu0 0.0
      %727 = vmatprep.subr.mxu0 0.0
      %728 = vmatpush1.msra.mxu0 0.0
      %729 = vmatprep.subr.mxu0 0.0
      %730 = vmatpush1.msra.mxu0 0.0
      %731 = vmatprep.subr.mxu0 0.0
      %732 = vmatpush1.msra.mxu0 0.0
      %733 = vmatprep.subr.mxu0 0.0
      %734 = vmatpush1.msra.mxu0 0.0
      %735 = vmatprep.subr.mxu0 0.0
      %736 = vmatpush1.msra.mxu0 0.0
      %737 = vmatprep.subr.mxu0 0.0
      %738 = vmatpush1.msra.mxu0 0.0
      %739 = vmatprep.subr.mxu0 0.0
      %740 = vmatpush1.msra.mxu0 0.0
      %741 = vmatprep.subr.mxu0 0.0
      %742 = vmatpush1.msra.mxu0 0.0
      %743 = vmatprep.subr.mxu0 0.0
      %744 = vmatpush1.msra.mxu0 0.0
      %745 = vmatprep.subr.mxu0 0.0
      %746 = vmatpush1.msra.mxu0 0.0
      %747 = vmatprep.subr.mxu0 0.0
      %748 = vmatpush1.msra.mxu0 0.0
      %749 = vmatprep.subr.mxu0 0.0
      %750 = vmatpush1.msra.mxu0 0.0
      %751 = vmatprep.subr.mxu0 0.0
      %752 = vmatpush1.msra.mxu0 0.0
      %753 = vmatprep.subr.mxu0 0.0
      %754 = vmatpush1.msra.mxu0 0.0
      %755 = vmatprep.subr.mxu0 0.0
      %756 = vmatpush1.msra.mxu0 0.0
      %757 = vmatprep.subr.mxu0 0.0
      %758 = vmatpush1.msra.mxu0 0.0
      %759 = vmatprep.subr.mxu0 0.0
      %760 = vmatpush1.msra.mxu0 0.0
      %761 = vmatprep.subr.mxu0 0.0
      %762 = vmatpush1.msra.mxu0 0.0
      %763 = vmatprep.subr.mxu0 0.0
      %764 = vmatpush1.msra.mxu0 0.0
      %765 = vmatprep.subr.mxu0 0.0
      %766 = vmatpush1.msra.mxu0 0.0
      %767 = vmatprep.subr.mxu0 0.0
      %768 = vmatpush1.msra.mxu0 0.0
      %769 = vmatprep.mubr.f32.mxu0 0.0
      %770 = vmatmul.mubr.f32.gmra.mrb[0].mxu0 %v703
      %v771 = vpop.f32.mrb[0].mxu0
      %v772 = vadd.f32 0.0, %v771
      %v773 = vpop.f32.mrb[0].mxu0
      %774 = vdwg.mxu0
      %776 = vrot.lane.b32.xlu0 %v442, 8
      %v777 = vpop.permute.xlu0 %776
      %780 = vrot.lane.b32.xlu0 %v607, 16
      %v781 = vpop.permute.xlu0 %780
      %784 = vrot.lane.b32.xlu0 %v772, 24
      %v785 = vpop.permute.xlu0 %784
      %v787 = vsel %vm117, %v277, %v777
      %vm788 = vcmask 130048
      %v789 = vsel %vm788, %v787, %v781
      %vm790 = vcmask 195584
      %v791 = vsel %vm790, %v789, %v785
      %vm792 = vcmask 261120
      %793 = vst.msk [vmem:[%s111] sm:$0xff] %vm792, %v791
      %p794 = scmp.lt.s32.totalorder %s12, 1
      %s795 = scalar_select %p794, %s12, 1
      %s796 = smul.addr %s795, 8
      %s797 = scalar_lea.vmem %s1, %s796
      // Predicated region
      $region25: #{multi_head_attention.4} parent=23 // pred_check
        %p798 = pneg %p56
      $region26: #{multi_head_attention.4} parent=23 // pred_check_branch
        %800 = sbr.rel (%p798) target = $region28
      $region27: #{multi_head_attention.4} parent=23 // pred_region
        _
      $region28: #{multi_head_attention.4} parent=23 // pred_fallthru
        _
    $region24: #{multi_head_attention.4} parent=5 // pred_fallthru
      _
    %p801 = scmp.le.s32.totalorder 2, %s7
    // Predicated region
    $region29: #{multi_head_attention.4} parent=5 // pred_check
      %p802 = pneg %p801
    $region30: #{multi_head_attention.4} parent=5 // pred_check_branch
      %804 = sbr.rel (%p802) target = $region32
    $region31: #{multi_head_attention.4} parent=5 // pred_region
      %s805 = ssub.s32 %s7, 2
      // Predicated region
      $region33: #{multi_head_attention.4} parent=31 // pred_check
        %p806 = pneg %p62
      $region34: #{multi_head_attention.4} parent=31 // pred_check_branch
        %808 = sbr.rel (%p806) target = $region36
      $region35: #{multi_head_attention.4} parent=31 // pred_region
        %p809 = scmp.lt.s32.totalorder %s13, 1
        %s810 = scalar_select %p809, %s13, 1
        %s811 = smul.addr %s810, 8
        %s812 = scalar_lea.vmem %s1, %s811
      $region36: #{multi_head_attention.4} parent=31 // pred_fallthru
        _
    $region32: #{multi_head_attention.4} parent=5 // pred_fallthru
      _
  $region6: #{multi_head_attention.4} parent=0 // loop_footer
    %s11 = sadd.s32 1, %s7
  $region7: #{multi_head_attention.4} parent=0 // loop_footer_branch
    %6 = sbr.rel target = $region3
  $region8: #{multi_head_attention.4} parent=0 // loop_exit
    _

// kernel: multi_head_attention.5
$region0: #{multi_head_attention.5}
  #allocation0 [shape = 'u32[]', space=smem, size = 0x4, offset = 0x4, fixed_abs, tag = 'smem constant byte address 0x4 - core index']
  #allocation1 [shape = 'u32[144,128]{1,0:T(1,128)}', space=vmem, size = 0x12000, scoped, tag = 'internal scratch']
  #allocation2 [shape = 'f32[16,32]{1,0:T(8,128)}', space=vmem, size = 0x2000, scoped, tag = 'scratch operand']
  %s0 = inlined_call_operand.vmem [shape: f32[16,32], index: 0, kind: input, shape index: {}]
  %s1 = inlined_call_operand.vmem [shape: f32[32,32], index: 1, kind: input, shape index: {}]
  %s2 = inlined_call_operand.vmem [shape: f32[1,32], index: 2, kind: input, shape index: {}]
  %s3 = inlined_call_operand.vmem [shape: f32[16,32], index: 3, kind: output, shape index: {}]
  %s4 = sld [smem:[#allocation0]]
  $region30: #{multi_head_attention.5} parent=0
    _
  %s6 = ssub.s32 1, %s4
  %s7 = scalar_select 0, %s6, %s4
  // Predicated region
  $region2: #{multi_head_attention.5} parent=0 // pred_check
    _
  $region3: #{multi_head_attention.5} parent=0 // pred_check_branch
    %9 = sbr.rel (0) target = $region5
  $region4: #{multi_head_attention.5} parent=0 // pred_region
    _
  $region5: #{multi_head_attention.5} parent=0 // pred_fallthru
    _
  // Predicated region
  $region6: #{multi_head_attention.5} parent=0 // pred_check
    _
  $region7: #{multi_head_attention.5} parent=0 // pred_check_branch
    %11 = sbr.rel (0) target = $region9
  $region8: #{multi_head_attention.5} parent=0 // pred_region
    _
  $region9: #{multi_head_attention.5} parent=0 // pred_fallthru
    _
  // Predicated region
  $region10: #{multi_head_attention.5} parent=0 // pred_check
    _
  $region11: #{multi_head_attention.5} parent=0 // pred_check_branch
    %13 = sbr.rel (0) target = $region13
  $region12: #{multi_head_attention.5} parent=0 // pred_region
    _
  $region13: #{multi_head_attention.5} parent=0 // pred_fallthru
    _
  %p14 = scmp.eq.s32.totalorder 0, 0
  // Predicated region
  $region14: #{multi_head_attention.5} parent=0 // pred_check
    %p15 = pneg %p14
  $region15: #{multi_head_attention.5} parent=0 // pred_check_branch
    %17 = sbr.rel (%p15) target = $region17
  $region16: #{multi_head_attention.5} parent=0 // pred_region
    %vm18 = vcmask 261120
    %19 = vst.msk [vmem:[#allocation2] sm:$0xff] %vm18, 0.0
    %20 = vst.msk [vmem:[#allocation2 + $0x8] sm:$0xff] %vm18, 0.0
  $region17: #{multi_head_attention.5} parent=0 // pred_fallthru
    _
  %v21 = vld [vmem:[#allocation2] sm:$0xff]
  %v22 = vld [vmem:[#allocation2 + $0x8] sm:$0xff]
  %v23 = vld [vmem:[%s0] sm:$0xff]
  %v24 = vld [vmem:[%s0 + $0x8] sm:$0xff]
  %v25 = vld [vmem:[%s1] sm:$0xff]
  %v26 = vld [vmem:[%s1 + $0x8] sm:$0xff]
  %v27 = vld [vmem:[%s1 + $0x10] sm:$0xff]
  %v28 = vld [vmem:[%s1 + $0x18] sm:$0xff]
  %vm29 = vcmask 261120
  %v31 = vsel %vm29, %v23, 0
  %v34 = vsel %vm29, %v24, 0
  %36 = vmatprep.subr.mxu0 0.0
  %37 = vmatpush1.msra.mxu0 %v25
  %38 = vmatprep.subr.mxu0 0.0
  %39 = vmatpush1.msra.mxu0 %v26
  %40 = vmatprep.subr.mxu0 0.0
  %41 = vmatpush1.msra.mxu0 %v27
  %42 = vmatprep.subr.mxu0 0.0
  %43 = vmatpush1.msra.mxu0 %v28
  %44 = vmatprep.subr.mxu0 0.0
  %45 = vmatpush1.msra.mxu0 0.0
  %46 = vmatprep.subr.mxu0 0.0
  %47 = vmatpush1.msra.mxu0 0.0
  %48 = vmatprep.subr.mxu0 0.0
  %49 = vmatpush1.msra.mxu0 0.0
  %50 = vmatprep.subr.mxu0 0.0
  %51 = vmatpush1.msra.mxu0 0.0
  %52 = vmatprep.subr.mxu0 0.0
  %53 = vmatpush1.msra.mxu0 0.0
  %54 = vmatprep.subr.mxu0 0.0
  %55 = vmatpush1.msra.mxu0 0.0
  %56 = vmatprep.subr.mxu0 0.0
  %57 = vmatpush1.msra.mxu0 0.0
  %58 = vmatprep.subr.mxu0 0.0
  %59 = vmatpush1.msra.mxu0 0.0
  %60 = vmatprep.subr.mxu0 0.0
  %61 = vmatpush1.msra.mxu0 0.0
  %62 = vmatprep.subr.mxu0 0.0
  %63 = vmatpush1.msra.mxu0 0.0
  %64 = vmatprep.subr.mxu0 0.0
  %65 = vmatpush1.msra.mxu0 0.0
  %66 = vmatprep.subr.mxu0 0.0
  %67 = vmatpush1.msra.mxu0 0.0
  %68 = vmatprep.subr.mxu0 0.0
  %69 = vmatpush1.msra.mxu0 0.0
  %70 = vmatprep.subr.mxu0 0.0
  %71 = vmatpush1.msra.mxu0 0.0
  %72 = vmatprep.subr.mxu0 0.0
  %73 = vmatpush1.msra.mxu0 0.0
  %74 = vmatprep.subr.mxu0 0.0
  %75 = vmatpush1.msra.mxu0 0.0
  %76 = vmatprep.subr.mxu0 0.0
  %77 = vmatpush1.msra.mxu0 0.0
  %78 = vmatprep.subr.mxu0 0.0
  %79 = vmatpush1.msra.mxu0 0.0
  %80 = vmatprep.subr.mxu0 0.0
  %81 = vmatpush1.msra.mxu0 0.0
  %82 = vmatprep.subr.mxu0 0.0
  %83 = vmatpush1.msra.mxu0 0.0
  %84 = vmatprep.subr.mxu0 0.0
  %85 = vmatpush1.msra.mxu0 0.0
  %86 = vmatprep.subr.mxu0 0.0
  %87 = vmatpush1.msra.mxu0 0.0
  %88 = vmatprep.subr.mxu0 0.0
  %89 = vmatpush1.msra.mxu0 0.0
  %90 = vmatprep.subr.mxu0 0.0
  %91 = vmatpush1.msra.mxu0 0.0
  %92 = vmatprep.subr.mxu0 0.0
  %93 = vmatpush1.msra.mxu0 0.0
  %94 = vmatprep.subr.mxu0 0.0
  %95 = vmatpush1.msra.mxu0 0.0
  %96 = vmatprep.subr.mxu0 0.0
  %97 = vmatpush1.msra.mxu0 0.0
  %98 = vmatprep.subr.mxu0 0.0
  %99 = vmatpush1.msra.mxu0 0.0
  %100 = vmatprep.mubr.f32.mxu0 0.0
  %101 = vmatmul.mubr.f32.gmra.mrb[0].mxu0 %v31
  %v102 = vpop.f32.mrb[0].mxu0
  %v103 = vadd.f32 0.0, %v102
  %v104 = vpop.f32.mrb[0].mxu0
  %105 = vmatprep.mubr.f32.mxu0 0.0
  %106 = vmatmul.mubr.f32.gmra.mrb[0].mxu0 %v34
  %v107 = vpop.f32.mrb[0].mxu0
  %v108 = vadd.f32 0.0, %v107
  %v109 = vpop.f32.mrb[0].mxu0
  %110 = vdwg.mxu0
  %v111 = vadd.f32 %v21, %v103
  %v112 = vadd.f32 %v22, %v108
  %113 = vst.msk [vmem:[#allocation2] sm:$0xff] %vm29, %v111
  %114 = vst.msk [vmem:[#allocation2 + $0x8] sm:$0xff] %vm29, %v112
  // Predicated region
  $region18: #{multi_head_attention.5} parent=0 // pred_check
    %p115 = pneg %p14
  $region19: #{multi_head_attention.5} parent=0 // pred_check_branch
    %117 = sbr.rel (%p115) target = $region21
  $region20: #{multi_head_attention.5} parent=0 // pred_region
    %v118 = vld [vmem:[#allocation2] sm:$0xff]
    %v119 = vld [vmem:[#allocation2 + $0x8] sm:$0xff]
    %v120 = vld [vmem:[%s2] sm:$0x1]
    %v122 = vlaneseq
    %v123 = vshrl.u32 %v122, 7
    %v124 = vsub.s32 0, %v123
    %v125 = vrot.slane %v120, %v124
    %v127 = vadd.f32 %v118, %v125
    %v128 = vadd.f32 %v119, %v125
    %129 = vst.msk [vmem:[%s3] sm:$0xff] %vm29, %v127
    %130 = vst.msk [vmem:[%s3 + $0x8] sm:$0xff] %vm29, %v128
  $region21: #{multi_head_attention.5} parent=0 // pred_fallthru
    _
  // Predicated region
  $region22: #{multi_head_attention.5} parent=0 // pred_check
    _
  $region23: #{multi_head_attention.5} parent=0 // pred_check_branch
    %132 = sbr.rel (0) target = $region25
  $region24: #{multi_head_attention.5} parent=0 // pred_region
    _
  $region25: #{multi_head_attention.5} parent=0 // pred_fallthru
    _
  // Predicated region
  $region26: #{multi_head_attention.5} parent=0 // pred_check
    _
  $region27: #{multi_head_attention.5} parent=0 // pred_check_branch
    %134 = sbr.rel (0) target = $region29
  $region28: #{multi_head_attention.5} parent=0 // pred_region
    _
  $region29: #{multi_head_attention.5} parent=0 // pred_fallthru
    _

</llo_original>
